<compile_context>
chip_gen: v7x
topology: tpu7x:2x2x1
jax: 0.10.0
libtpu: 0.0.40
codegen_flags: <defaults>
</compile_context>

<pallas_src>
import functools

import jax
import jax.numpy as jnp
import numpy as np
from jax.experimental import pallas as pl
from jax.experimental.pallas import tpu as pltpu


def _round_up(a, b):
    return (a + b - 1) // b * b


def _vmem_capacity_bytes():
    """Physical VMEM per core; conservative 64 MiB if the query is unavailable."""
    try:
        cap = getattr(pltpu.get_tpu_info(), "vmem_capacity_bytes", None)
        if cap:
            return int(cap)
    except Exception:
        pass
    return 64 * 1024 * 1024


def _pick_h_chunk(Hp, max_chunk=768):
    """Largest H chunk <= max_chunk that divides Hp (Hp is a multiple of 128)."""
    if Hp <= max_chunk:
        return Hp
    for c in (768, 512, 256, 384, 128):   # prefer 256-multiples (MXU width)
        if c <= max_chunk and Hp % c == 0:
            return c
    return Hp


def _ffn_conv_kernel(x_ref, w1_ref, b1_ref, w2_ref, b2_ref, o_ref,
                     *, T, tT, pad, Se, Hc, K):
    # x_ref : (Tpad, Cp)   full zero-padded sequence for this batch element
    # w1_ref: (K, Cp, Hp)  per-tap conv1 weights
    # b1_ref: (1, Hp)      f32
    # w2_ref: (K, Hp, Cp)  per-tap conv2 weights
    # b2_ref: (1, Cp)      f32
    # o_ref : (tT, Cp)     output time tile
    t = pl.program_id(1)
    Cp = x_ref.shape[1]
    Hp = w1_ref.shape[2]
    dtype = w2_ref.dtype

    t0 = pl.multiple_of(t * tT, tT)

    # K shifted input windows (Se, Cp): loaded once, reused by every H chunk.
    # x is padded with 2*pad zeros on the left, so padded row (t*tT + r + k)
    # corresponds to hidden slab row r (orig hidden time t*tT - pad + r).
    x_win = [x_ref[pl.ds(t0 + k, Se), :] for k in range(K)]

    # Hidden rows whose original time index falls outside [0, T) must be zero
    # before conv2 ("same" padding of the second conv).  This select is cheap
    # (~1-3% VPU) and is applied unconditionally for simplicity; boundary-only
    # gating was considered and skipped (lowest-value review item).
    row = jax.lax.broadcasted_iota(jnp.int32, (Se, 1), 0)
    orig = t * tT - pad + row
    valid = jnp.logical_and(orig >= 0, orig < T)

    acc2 = jnp.zeros((tT, Cp), jnp.float32)
    for h0 in range(0, Hp, Hc):             # static unroll over H chunks
        hc = min(Hc, Hp - h0)

        # ---- conv1 chunk: (Se, hc) ------------------------------------------
        acc1 = jnp.zeros((Se, hc), jnp.float32)
        for k in range(K):                  # K MXU matmuls, f32 accumulation
            acc1 = acc1 + jnp.dot(x_win[k], w1_ref[k, :, h0:h0 + hc],
                                  preferred_element_type=jnp.float32)
        hidden = jnp.maximum(acc1 + b1_ref[:, h0:h0 + hc].astype(jnp.float32), 0.0)
        # dropout: identity (inference).  TODO(synk): training-mode dropout not implemented.
        hidden = jnp.where(valid, hidden, 0.0).astype(dtype)

        # ---- conv2 contribution of this chunk --------------------------------
        # Aligned full-slab matmul per tap; the per-tap shift is applied to the
        # SMALL (Se, Cp) partial, not the large (Se, hc) hidden operand.
        for k in range(K):
            part = jnp.dot(hidden, w2_ref[k, h0:h0 + hc, :],
                           preferred_element_type=jnp.float32)
            acc2 = acc2 + part[k:k + tT, :]

    o_ref[...] = (acc2 + b2_ref[...].astype(jnp.float32)).astype(o_ref.dtype)


def prepare_params(w1, b1, w2, b2, dtype):
    """One-time parameter prep (hoisted out of the per-call path).

    w1: (H, C_in, K) torch conv1 layout; w2: (C_in, H, K) torch conv2 layout.
    Returns per-tap matmul weights (K, in, out) in `dtype`, channel-padded to
    lane-dense multiples of 128, plus 2-D f32 (padded) biases.
    """
    H, C_in, K = w1.shape
    Cp = _round_up(C_in, 128)
    Hp = _round_up(H, 128)
    w1_k = jnp.transpose(w1, (2, 1, 0)).astype(dtype)   # (K, C_in, H)
    w2_k = jnp.transpose(w2, (2, 1, 0)).astype(dtype)   # (K, H, C_in)
    w1_k = jnp.pad(w1_k, ((0, 0), (0, Cp - C_in), (0, Hp - H)))
    w2_k = jnp.pad(w2_k, ((0, 0), (0, Hp - H), (0, Cp - C_in)))
    b1_2d = jnp.pad(b1.reshape(1, -1).astype(jnp.float32), ((0, 0), (0, Hp - H)))
    b2_2d = jnp.pad(b2.reshape(1, -1).astype(jnp.float32), ((0, 0), (0, Cp - C_in)))
    return w1_k, b1_2d, w2_k, b2_2d


def multi_layered_conv1d(x, params, *, time_tile=512):
    """x: (B, T, C_in); params from prepare_params(); returns (B, T, C_in)."""
    w1_k, b1_2d, w2_k, b2_2d = params
    B, T, C_in = x.shape
    K, Cp, Hp = w1_k.shape
    assert K % 2 == 1, "same-length output requires an odd kernel size"
    assert Cp >= C_in
    pad = (K - 1) // 2
    isz = jnp.dtype(x.dtype).itemsize

    # ---- generation-aware VMEM budget and tile planning ----------------------
    budget = int(_vmem_capacity_bytes() * 0.75)   # 48 MiB v7x, 96 MiB v5e/v6e
    Epad = _round_up(2 * pad, 8) if pad else 0    # extra slab rows (aligned)
    Hc = _pick_h_chunk(Hp)

    T8 = _round_up(T, 8)
    tT = max(8, _round_up(min(time_tile, T8), 8))
    if B == 1:
        # Ensure >= 2 time tiles so both v7x TensorCores get work.
        tT = max(8, min(tT, _round_up((T + 1) // 2, 8)))

    def est(tt):
        Tr_ = _round_up(T, tt)
        Tpad_ = Tr_ + Epad + K - 1
        Se_ = tt + Epad
        return (2 * Tpad_ * Cp * isz            # x block (double-buffered)
                + 2 * tt * Cp * isz             # out block (double-buffered)
                + 2 * K * Cp * Hp * isz         # w1 (worst case: double-buffered)
                + 2 * K * Hp * Cp * isz         # w2
                + 2 * (Hp + Cp) * 4             # biases
                + K * Se_ * Cp * isz            # hoisted shifted x windows
                + Se_ * Hc * 4 + Se_ * Hc * isz  # conv1 acc + hidden chunk
                + Se_ * Cp * 4 + tt * Cp * 4)    # conv2 partial + output acc
    while tT > 8 and est(tT) > budget:
        tT = max(8, _round_up(tT // 2, 8))
    # TODO(synk): for extremely long sequences the whole-sequence x block can
    # still exceed the budget; a halo'd time-blocked x spec would be needed.

    Tr = _round_up(T, tT)
    nT = Tr // tT
    Se = tT + Epad
    Tpad = Tr + Epad + K - 1

    # Single wrapper-side pad covers: conv1 left halo (2*pad), time round-up,
    # the aligned slab overshoot, and lane-dense channel padding.
    x_p = jnp.pad(x, ((0, 0), (2 * pad, Tpad - T - 2 * pad), (0, Cp - C_in)))

    kernel = functools.partial(_ffn_conv_kernel, T=T, tT=tT, pad=pad,
                               Se=Se, Hc=Hc, K=K)

    def launch(single_buffer_weights):
        def wspec(shape, imap):
            # Grid-constant operands: no point double-buffering them.
            if single_buffer_weights:
                return pl.BlockSpec(shape, imap, pipeline_mode=pl.Buffered(1))
            return pl.BlockSpec(shape, imap)

        out = pl.pallas_call(
            kernel,
            out_shape=jax.ShapeDtypeStruct((B, Tr, Cp), x.dtype),
            grid_spec=pltpu.PrefetchScalarGridSpec(
                num_scalar_prefetch=0,
                grid=(B, nT),
                in_specs=[
                    pl.BlockSpec((None, Tpad, Cp), lambda b, t: (b, 0, 0)),
                    wspec((K, Cp, Hp), lambda b, t: (0, 0, 0)),
                    wspec((1, Hp), lambda b, t: (0, 0)),
                    wspec((K, Hp, Cp), lambda b, t: (0, 0, 0)),
                    wspec((1, Cp), lambda b, t: (0, 0)),
                ],
                out_specs=pl.BlockSpec((None, tT, Cp), lambda b, t: (b, t, 0)),
            ),
            compiler_params=pltpu.CompilerParams(
                dimension_semantics=("parallel", "parallel"),
                vmem_limit_bytes=int(budget),
            ),
        )(x_p, w1_k, b1_2d, w2_k, b2_2d)
        return jax.block_until_ready(out)

    attempts = [True, False] if hasattr(pl, "Buffered") else [False]
    out, errs = None, []
    for sb in attempts:
        try:
            out = launch(sb)
            break
        except Exception as e:   # compat fallback if Buffered(1) is rejected
            errs.append(e)
    if out is None:
        raise errs[-1]

    # Skip the extra HBM copy when no time round-up / channel padding occurred.
    if Tr != T or Cp != C_in:
        out = out[:, :T, :C_in]
    return out


def _reference(x, w1, b1, w2, b2):
    """Pure-JAX reference replicating the PyTorch forward (eval mode)."""
    K = w1.shape[-1]
    pad = (K - 1) // 2
    w1_k = jnp.transpose(w1, (2, 1, 0)).astype(x.dtype)
    w2_k = jnp.transpose(w2, (2, 1, 0)).astype(x.dtype)

    def same_conv(h, wk, bias):  # h: (B, T, C), wk: (K, C, C_out)
        B, T, C = h.shape
        hp = jnp.pad(h, ((0, 0), (pad, pad), (0, 0)))
        out = bias[None, None, :].astype(jnp.float32)
        for k in range(K):
            out = out + jnp.einsum("btc,co->bto", hp[:, k:k + T, :], wk[k],
                                   preferred_element_type=jnp.float32)
        return out

    h = jax.nn.relu(same_conv(x, w1_k, b1))
    y = same_conv(h.astype(x.dtype), w2_k, b2)
    return y.astype(x.dtype)


if __name__ == "__main__":
    # --- Test 1: small config, single time tile, f32, channels < 128 ---------
    #   input_channels = 32, linear_units = 64, kernel_size = 3, B = 2, T = 16.
    B, T, C_IN, H, K = 2, 16, 32, 64, 3

    key = jax.random.PRNGKey(0)
    k_x, k_w1, k_b1, k_w2, k_b2 = jax.random.split(key, 5)

    x = jax.random.normal(k_x, (B, T, C_IN), dtype=jnp.float32)
    w1 = jax.random.normal(k_w1, (H, C_IN, K), dtype=jnp.float32) * 0.1
    b1 = jax.random.normal(k_b1, (H,), dtype=jnp.float32) * 0.1
    w2 = jax.random.normal(k_w2, (C_IN, H, K), dtype=jnp.float32) * 0.1
    b2 = jax.random.normal(k_b2, (C_IN,), dtype=jnp.float32) * 0.1

    params = prepare_params(w1, b1, w2, b2, x.dtype)
    out = jax.block_until_ready(multi_layered_conv1d(x, params))
    ref = _reference(x, w1, b1, w2, b2)
    np.testing.assert_allclose(np.asarray(out), np.asarray(ref),
                               rtol=1e-5, atol=1e-5)
    assert out.shape == (B, T, C_IN)

    # --- Test 2: multi-tile with halos, ragged T, K = 5 -----------------------
    T2, K2 = 20, 5
    k2 = jax.random.split(jax.random.PRNGKey(1), 5)
    x2 = jax.random.normal(k2[0], (B, T2, C_IN), dtype=jnp.float32)
    w1b = jax.random.normal(k2[1], (H, C_IN, K2), dtype=jnp.float32) * 0.1
    b1b = jax.random.normal(k2[2], (H,), dtype=jnp.float32) * 0.1
    w2b = jax.random.normal(k2[3], (C_IN, H, K2), dtype=jnp.float32) * 0.1
    b2b = jax.random.normal(k2[4], (C_IN,), dtype=jnp.float32) * 0.1

    params2 = prepare_params(w1b, b1b, w2b, b2b, x2.dtype)
    out2 = jax.block_until_ready(multi_layered_conv1d(x2, params2, time_tile=8))
    ref2 = _reference(x2, w1b, b1b, w2b, b2b)
    np.testing.assert_allclose(np.asarray(out2), np.asarray(ref2),
                               rtol=1e-5, atol=1e-5)
    assert out2.shape == (B, T2, C_IN)

    # --- Test 3: bf16 operands, B == 1 (exercises the 2-tile time split) ------
    T3 = 24
    x3 = jax.random.normal(jax.random.PRNGKey(2), (1, T3, C_IN),
                           dtype=jnp.bfloat16)
    params_b = prepare_params(w1b, b1b, w2b, b2b, jnp.bfloat16)
    out3 = jax.block_until_ready(multi_layered_conv1d(x3, params_b))
    ref3 = _reference(x3, w1b, b1b, w2b, b2b)
    np.testing.assert_allclose(np.asarray(out3.astype(jnp.float32)),
                               np.asarray(ref3.astype(jnp.float32)),
                               rtol=5e-2, atol=5e-2)
    assert out3.shape == (1, T3, C_IN)

    print("KERNEL_OK")
</pallas_src>

<mosaic_0001>
module attributes {stable_mosaic.version = 11 : i64} {
  func.func @_ffn_conv_kernel(%arg0: i32, %arg1: i32, %arg2: memref<1x26x128xf32, #tpu.memory_space<vmem>>, %arg3: memref<3x128x128xf32, #tpu.memory_space<vmem>>, %arg4: memref<1x128xf32, #tpu.memory_space<vmem>>, %arg5: memref<3x128x128xf32, #tpu.memory_space<vmem>>, %arg6: memref<1x128xf32, #tpu.memory_space<vmem>>, %arg7: memref<1x16x128xf32, #tpu.memory_space<vmem>>) attributes {dimension_semantics = [#tpu.dimension_semantics<parallel>, #tpu.dimension_semantics<parallel>], iteration_bounds = array<i64: 2, 1>, scalar_prefetch = 0 : i64, scratch_operands = 0 : i64, tpu.core_type = #tpu.core_type<tc>, window_params = [{transform_indices = @transform_0, window_bounds = array<i64: 1, 26, 128>}, {pipeline_mode = #tpu.pipeline_mode<synchronous>, transform_indices = @transform_1, window_bounds = array<i64: 3, 128, 128>}, {pipeline_mode = #tpu.pipeline_mode<synchronous>, transform_indices = @transform_2, window_bounds = array<i64: 1, 128>}, {pipeline_mode = #tpu.pipeline_mode<synchronous>, transform_indices = @transform_3, window_bounds = array<i64: 3, 128, 128>}, {pipeline_mode = #tpu.pipeline_mode<synchronous>, transform_indices = @transform_4, window_bounds = array<i64: 1, 128>}, {transform_indices = @transform_5, window_bounds = array<i64: 1, 16, 128>}]} {
    %c16_i32 = arith.constant 16 : i32
    %0 = arith.muli %arg1, %c16_i32 : i32
    %1 = tpu.assume_multiple %0, 16 : i32
    %c0_i32 = arith.constant 0 : i32
    %2 = arith.addi %1, %c0_i32 : i32
    %c0 = arith.constant 0 : index
    %3 = arith.index_cast %2 : i32 to index
    %c0_0 = arith.constant 0 : index
    %4 = vector.load %arg2[%c0, %3, %c0_0] : memref<1x26x128xf32, #tpu.memory_space<vmem>>, vector<1x24x128xf32>
    %5 = vector.shape_cast %4 : vector<1x24x128xf32> to vector<24x128xf32>
    %c1_i32 = arith.constant 1 : i32
    %6 = arith.addi %1, %c1_i32 : i32
    %c0_1 = arith.constant 0 : index
    %7 = arith.index_cast %6 : i32 to index
    %c0_2 = arith.constant 0 : index
    %8 = vector.load %arg2[%c0_1, %7, %c0_2] : memref<1x26x128xf32, #tpu.memory_space<vmem>>, vector<1x24x128xf32>
    %9 = vector.shape_cast %8 : vector<1x24x128xf32> to vector<24x128xf32>
    %c2_i32 = arith.constant 2 : i32
    %10 = arith.addi %1, %c2_i32 : i32
    %c0_3 = arith.constant 0 : index
    %11 = arith.index_cast %10 : i32 to index
    %c0_4 = arith.constant 0 : index
    %12 = vector.load %arg2[%c0_3, %11, %c0_4] : memref<1x26x128xf32, #tpu.memory_space<vmem>>, vector<1x24x128xf32>
    %13 = vector.shape_cast %12 : vector<1x24x128xf32> to vector<24x128xf32>
    %14 = tpu.iota {dimensions = array<i32: 0>} : vector<24x1xi32>
    %c16_i32_5 = arith.constant 16 : i32
    %15 = arith.muli %arg1, %c16_i32_5 : i32
    %c1_i32_6 = arith.constant 1 : i32
    %16 = arith.subi %15, %c1_i32_6 : i32
    %17 = vector.broadcast %16 : i32 to vector<24x1xi32>
    %18 = arith.addi %17, %14 : vector<24x1xi32>
    %c0_i32_7 = arith.constant 0 : i32
    %19 = vector.broadcast %c0_i32_7 : i32 to vector<24x1xi32>
    %20 = arith.cmpi sge, %18, %19 : vector<24x1xi32>
    %c16_i32_8 = arith.constant 16 : i32
    %21 = vector.broadcast %c16_i32_8 : i32 to vector<24x1xi32>
    %22 = arith.cmpi slt, %18, %21 : vector<24x1xi32>
    %23 = arith.andi %20, %22 : vector<24x1xi1>
    %cst = arith.constant 0.000000e+00 : f32
    %24 = vector.broadcast %cst : f32 to vector<16x128xf32>
    %cst_9 = arith.constant 0.000000e+00 : f32
    %25 = vector.broadcast %cst_9 : f32 to vector<24x128xf32>
    %c0_10 = arith.constant 0 : index
    %c0_11 = arith.constant 0 : index
    %c0_12 = arith.constant 0 : index
    %26 = vector.load %arg3[%c0_10, %c0_11, %c0_12] : memref<3x128x128xf32, #tpu.memory_space<vmem>>, vector<1x128x128xf32>
    %27 = vector.shape_cast %26 : vector<1x128x128xf32> to vector<128x128xf32>
    %cst_13 = arith.constant dense<0.000000e+00> : vector<24x128xf32>
    %28 = tpu.matmul %5, %27, %cst_13 {dimension_numbers = #tpu.dot_dimension_numbers<[1], [0], [0], [1], [0, 0, 1, 1], [], []>} : vector<24x128xf32>, vector<128x128xf32>, vector<24x128xf32> -> vector<24x128xf32>
    %29 = arith.addf %25, %28 : vector<24x128xf32>
    %c1 = arith.constant 1 : index
    %c0_14 = arith.constant 0 : index
    %c0_15 = arith.constant 0 : index
    %30 = vector.load %arg3[%c1, %c0_14, %c0_15] : memref<3x128x128xf32, #tpu.memory_space<vmem>>, vector<1x128x128xf32>
    %31 = vector.shape_cast %30 : vector<1x128x128xf32> to vector<128x128xf32>
    %cst_16 = arith.constant dense<0.000000e+00> : vector<24x128xf32>
    %32 = tpu.matmul %9, %31, %cst_16 {dimension_numbers = #tpu.dot_dimension_numbers<[1], [0], [0], [1], [0, 0, 1, 1], [], []>} : vector<24x128xf32>, vector<128x128xf32>, vector<24x128xf32> -> vector<24x128xf32>
    %33 = arith.addf %29, %32 : vector<24x128xf32>
    %c2 = arith.constant 2 : index
    %c0_17 = arith.constant 0 : index
    %c0_18 = arith.constant 0 : index
    %34 = vector.load %arg3[%c2, %c0_17, %c0_18] : memref<3x128x128xf32, #tpu.memory_space<vmem>>, vector<1x128x128xf32>
    %35 = vector.shape_cast %34 : vector<1x128x128xf32> to vector<128x128xf32>
    %cst_19 = arith.constant dense<0.000000e+00> : vector<24x128xf32>
    %36 = tpu.matmul %13, %35, %cst_19 {dimension_numbers = #tpu.dot_dimension_numbers<[1], [0], [0], [1], [0, 0, 1, 1], [], []>} : vector<24x128xf32>, vector<128x128xf32>, vector<24x128xf32> -> vector<24x128xf32>
    %37 = arith.addf %33, %36 : vector<24x128xf32>
    %c0_20 = arith.constant 0 : index
    %c0_21 = arith.constant 0 : index
    %38 = vector.load %arg4[%c0_20, %c0_21] : memref<1x128xf32, #tpu.memory_space<vmem>>, vector<1x128xf32>
    %39 = vector.broadcast %38 : vector<1x128xf32> to vector<24x128xf32>
    %40 = arith.addf %37, %39 : vector<24x128xf32>
    %cst_22 = arith.constant 0.000000e+00 : f32
    %41 = vector.broadcast %cst_22 : f32 to vector<24x128xf32>
    %42 = arith.maximumf %40, %41 : vector<24x128xf32>
    %cst_23 = arith.constant 0.000000e+00 : f32
    %43 = vector.shape_cast %23 : vector<24x1xi1> to vector<24x1xi1>
    %44 = vector.broadcast %43 : vector<24x1xi1> to vector<24x128xi1>
    %45 = vector.broadcast %cst_23 : f32 to vector<24x128xf32>
    %46 = arith.select %44, %42, %45 : vector<24x128xi1>, vector<24x128xf32>
    %c0_24 = arith.constant 0 : index
    %c0_25 = arith.constant 0 : index
    %c0_26 = arith.constant 0 : index
    %47 = vector.load %arg5[%c0_24, %c0_25, %c0_26] : memref<3x128x128xf32, #tpu.memory_space<vmem>>, vector<1x128x128xf32>
    %48 = vector.shape_cast %47 : vector<1x128x128xf32> to vector<128x128xf32>
    %cst_27 = arith.constant dense<0.000000e+00> : vector<24x128xf32>
    %49 = tpu.matmul %46, %48, %cst_27 {dimension_numbers = #tpu.dot_dimension_numbers<[1], [0], [0], [1], [0, 0, 1, 1], [], []>} : vector<24x128xf32>, vector<128x128xf32>, vector<24x128xf32> -> vector<24x128xf32>
    %50 = vector.extract_strided_slice %49 {offsets = [0, 0], sizes = [16, 128], strides = [1, 1]} : vector<24x128xf32> to vector<16x128xf32>
    %51 = arith.addf %24, %50 : vector<16x128xf32>
    %c1_28 = arith.constant 1 : index
    %c0_29 = arith.constant 0 : index
    %c0_30 = arith.constant 0 : index
    %52 = vector.load %arg5[%c1_28, %c0_29, %c0_30] : memref<3x128x128xf32, #tpu.memory_space<vmem>>, vector<1x128x128xf32>
    %53 = vector.shape_cast %52 : vector<1x128x128xf32> to vector<128x128xf32>
    %cst_31 = arith.constant dense<0.000000e+00> : vector<24x128xf32>
    %54 = tpu.matmul %46, %53, %cst_31 {dimension_numbers = #tpu.dot_dimension_numbers<[1], [0], [0], [1], [0, 0, 1, 1], [], []>} : vector<24x128xf32>, vector<128x128xf32>, vector<24x128xf32> -> vector<24x128xf32>
    %55 = vector.extract_strided_slice %54 {offsets = [1, 0], sizes = [16, 128], strides = [1, 1]} : vector<24x128xf32> to vector<16x128xf32>
    %56 = arith.addf %51, %55 : vector<16x128xf32>
    %c2_32 = arith.constant 2 : index
    %c0_33 = arith.constant 0 : index
    %c0_34 = arith.constant 0 : index
    %57 = vector.load %arg5[%c2_32, %c0_33, %c0_34] : memref<3x128x128xf32, #tpu.memory_space<vmem>>, vector<1x128x128xf32>
    %58 = vector.shape_cast %57 : vector<1x128x128xf32> to vector<128x128xf32>
    %cst_35 = arith.constant dense<0.000000e+00> : vector<24x128xf32>
    %59 = tpu.matmul %46, %58, %cst_35 {dimension_numbers = #tpu.dot_dimension_numbers<[1], [0], [0], [1], [0, 0, 1, 1], [], []>} : vector<24x128xf32>, vector<128x128xf32>, vector<24x128xf32> -> vector<24x128xf32>
    %60 = vector.extract_strided_slice %59 {offsets = [2, 0], sizes = [16, 128], strides = [1, 1]} : vector<24x128xf32> to vector<16x128xf32>
    %61 = arith.addf %56, %60 : vector<16x128xf32>
    %c0_36 = arith.constant 0 : index
    %c0_37 = arith.constant 0 : index
    %62 = vector.load %arg6[%c0_36, %c0_37] : memref<1x128xf32, #tpu.memory_space<vmem>>, vector<1x128xf32>
    %63 = vector.broadcast %62 : vector<1x128xf32> to vector<16x128xf32>
    %64 = arith.addf %61, %63 : vector<16x128xf32>
    %c0_38 = arith.constant 0 : index
    %c0_39 = arith.constant 0 : index
    %c0_40 = arith.constant 0 : index
    %65 = vector.load %arg7[%c0_38, %c0_39, %c0_40] : memref<1x16x128xf32, #tpu.memory_space<vmem>>, vector<1x16x128xf32>
    %66 = vector.shape_cast %65 : vector<1x16x128xf32> to vector<16x128xf32>
    %67 = vector.shape_cast %64 : vector<16x128xf32> to vector<1x16x128xf32>
    tpu.vector_store %arg7[%c0_38, %c0_39, %c0_40], %67 {strides = array<i32>} : memref<1x16x128xf32, #tpu.memory_space<vmem>>, vector<1x16x128xf32>,
    return
  }
  func.func @transform_0(%arg0: i32, %arg1: i32) -> (i32, i32, i32) {
    %c0_i32 = arith.constant 0 : i32
    %c0_i32_0 = arith.constant 0 : i32
    %c0_i32_1 = arith.constant 0 : i32
    return %arg0, %c0_i32, %c0_i32_0 : i32, i32, i32
  }
  func.func @transform_1(%arg0: i32, %arg1: i32) -> (i32, i32, i32) {
    %c0_i32 = arith.constant 0 : i32
    %c0_i32_0 = arith.constant 0 : i32
    %c0_i32_1 = arith.constant 0 : i32
    %c0_i32_2 = arith.constant 0 : i32
    return %c0_i32, %c0_i32_0, %c0_i32_1 : i32, i32, i32
  }
  func.func @transform_2(%arg0: i32, %arg1: i32) -> (i32, i32) {
    %c0_i32 = arith.constant 0 : i32
    %c0_i32_0 = arith.constant 0 : i32
    %c0_i32_1 = arith.constant 0 : i32
    return %c0_i32, %c0_i32_0 : i32, i32
  }
  func.func @transform_3(%arg0: i32, %arg1: i32) -> (i32, i32, i32) {
    %c0_i32 = arith.constant 0 : i32
    %c0_i32_0 = arith.constant 0 : i32
    %c0_i32_1 = arith.constant 0 : i32
    %c0_i32_2 = arith.constant 0 : i32
    return %c0_i32, %c0_i32_0, %c0_i32_1 : i32, i32, i32
  }
  func.func @transform_4(%arg0: i32, %arg1: i32) -> (i32, i32) {
    %c0_i32 = arith.constant 0 : i32
    %c0_i32_0 = arith.constant 0 : i32
    %c0_i32_1 = arith.constant 0 : i32
    return %c0_i32, %c0_i32_0 : i32, i32
  }
  func.func @transform_5(%arg0: i32, %arg1: i32) -> (i32, i32, i32) {
    %c0_i32 = arith.constant 0 : i32
    %c0_i32_0 = arith.constant 0 : i32
    return %arg0, %arg1, %c0_i32 : i32, i32, i32
  }
}

module attributes {stable_mosaic.version = 11 : i64} {
  func.func @_ffn_conv_kernel(%arg0: i32, %arg1: i32, %arg2: memref<1x26x128xf32, #tpu.memory_space<vmem>>, %arg3: memref<3x128x128xf32, #tpu.memory_space<vmem>>, %arg4: memref<1x128xf32, #tpu.memory_space<vmem>>, %arg5: memref<3x128x128xf32, #tpu.memory_space<vmem>>, %arg6: memref<1x128xf32, #tpu.memory_space<vmem>>, %arg7: memref<1x16x128xf32, #tpu.memory_space<vmem>>) attributes {dimension_semantics = [#tpu.dimension_semantics<parallel>, #tpu.dimension_semantics<parallel>], iteration_bounds = array<i64: 2, 1>, scalar_prefetch = 0 : i64, scratch_operands = 0 : i64, tpu.core_type = #tpu.core_type<tc>, window_params = [{transform_indices = @transform_0, window_bounds = array<i64: 1, 26, 128>}, {pipeline_mode = #tpu.pipeline_mode<synchronous>, transform_indices = @transform_1, window_bounds = array<i64: 3, 128, 128>}, {pipeline_mode = #tpu.pipeline_mode<synchronous>, transform_indices = @transform_2, window_bounds = array<i64: 1, 128>}, {pipeline_mode = #tpu.pipeline_mode<synchronous>, transform_indices = @transform_3, window_bounds = array<i64: 3, 128, 128>}, {pipeline_mode = #tpu.pipeline_mode<synchronous>, transform_indices = @transform_4, window_bounds = array<i64: 1, 128>}, {transform_indices = @transform_5, window_bounds = array<i64: 1, 16, 128>}]} {
    %c16_i32 = arith.constant 16 : i32
    %0 = arith.muli %arg1, %c16_i32 : i32
    %1 = tpu.assume_multiple %0, 16 : i32
    %c0_i32 = arith.constant 0 : i32
    %2 = arith.addi %1, %c0_i32 : i32
    %c0 = arith.constant 0 : index
    %3 = arith.index_cast %2 : i32 to index
    %c0_0 = arith.constant 0 : index
    %4 = vector.load %arg2[%c0, %3, %c0_0] : memref<1x26x128xf32, #tpu.memory_space<vmem>>, vector<1x24x128xf32>
    %5 = vector.shape_cast %4 : vector<1x24x128xf32> to vector<24x128xf32>
    %c1_i32 = arith.constant 1 : i32
    %6 = arith.addi %1, %c1_i32 : i32
    %c0_1 = arith.constant 0 : index
    %7 = arith.index_cast %6 : i32 to index
    %c0_2 = arith.constant 0 : index
    %8 = vector.load %arg2[%c0_1, %7, %c0_2] : memref<1x26x128xf32, #tpu.memory_space<vmem>>, vector<1x24x128xf32>
    %9 = vector.shape_cast %8 : vector<1x24x128xf32> to vector<24x128xf32>
    %c2_i32 = arith.constant 2 : i32
    %10 = arith.addi %1, %c2_i32 : i32
    %c0_3 = arith.constant 0 : index
    %11 = arith.index_cast %10 : i32 to index
    %c0_4 = arith.constant 0 : index
    %12 = vector.load %arg2[%c0_3, %11, %c0_4] : memref<1x26x128xf32, #tpu.memory_space<vmem>>, vector<1x24x128xf32>
    %13 = vector.shape_cast %12 : vector<1x24x128xf32> to vector<24x128xf32>
    %14 = tpu.iota {dimensions = array<i32: 0>} : vector<24x1xi32>
    %c16_i32_5 = arith.constant 16 : i32
    %15 = arith.muli %arg1, %c16_i32_5 : i32
    %c1_i32_6 = arith.constant 1 : i32
    %16 = arith.subi %15, %c1_i32_6 : i32
    %17 = vector.broadcast %16 : i32 to vector<24x1xi32>
    %18 = arith.addi %17, %14 : vector<24x1xi32>
    %c0_i32_7 = arith.constant 0 : i32
    %19 = vector.broadcast %c0_i32_7 : i32 to vector<24x1xi32>
    %20 = arith.cmpi sge, %18, %19 : vector<24x1xi32>
    %c16_i32_8 = arith.constant 16 : i32
    %21 = vector.broadcast %c16_i32_8 : i32 to vector<24x1xi32>
    %22 = arith.cmpi slt, %18, %21 : vector<24x1xi32>
    %23 = arith.andi %20, %22 : vector<24x1xi1>
    %cst = arith.constant 0.000000e+00 : f32
    %24 = vector.broadcast %cst : f32 to vector<16x128xf32>
    %cst_9 = arith.constant 0.000000e+00 : f32
    %25 = vector.broadcast %cst_9 : f32 to vector<24x128xf32>
    %c0_10 = arith.constant 0 : index
    %c0_11 = arith.constant 0 : index
    %c0_12 = arith.constant 0 : index
    %26 = vector.load %arg3[%c0_10, %c0_11, %c0_12] : memref<3x128x128xf32, #tpu.memory_space<vmem>>, vector<1x128x128xf32>
    %27 = vector.shape_cast %26 : vector<1x128x128xf32> to vector<128x128xf32>
    %cst_13 = arith.constant dense<0.000000e+00> : vector<24x128xf32>
    %28 = tpu.matmul %5, %27, %cst_13 {dimension_numbers = #tpu.dot_dimension_numbers<[1], [0], [0], [1], [0, 0, 1, 1], [], []>} : vector<24x128xf32>, vector<128x128xf32>, vector<24x128xf32> -> vector<24x128xf32>
    %29 = arith.addf %25, %28 : vector<24x128xf32>
    %c1 = arith.constant 1 : index
    %c0_14 = arith.constant 0 : index
    %c0_15 = arith.constant 0 : index
    %30 = vector.load %arg3[%c1, %c0_14, %c0_15] : memref<3x128x128xf32, #tpu.memory_space<vmem>>, vector<1x128x128xf32>
    %31 = vector.shape_cast %30 : vector<1x128x128xf32> to vector<128x128xf32>
    %cst_16 = arith.constant dense<0.000000e+00> : vector<24x128xf32>
    %32 = tpu.matmul %9, %31, %cst_16 {dimension_numbers = #tpu.dot_dimension_numbers<[1], [0], [0], [1], [0, 0, 1, 1], [], []>} : vector<24x128xf32>, vector<128x128xf32>, vector<24x128xf32> -> vector<24x128xf32>
    %33 = arith.addf %29, %32 : vector<24x128xf32>
    %c2 = arith.constant 2 : index
    %c0_17 = arith.constant 0 : index
    %c0_18 = arith.constant 0 : index
    %34 = vector.load %arg3[%c2, %c0_17, %c0_18] : memref<3x128x128xf32, #tpu.memory_space<vmem>>, vector<1x128x128xf32>
    %35 = vector.shape_cast %34 : vector<1x128x128xf32> to vector<128x128xf32>
    %cst_19 = arith.constant dense<0.000000e+00> : vector<24x128xf32>
    %36 = tpu.matmul %13, %35, %cst_19 {dimension_numbers = #tpu.dot_dimension_numbers<[1], [0], [0], [1], [0, 0, 1, 1], [], []>} : vector<24x128xf32>, vector<128x128xf32>, vector<24x128xf32> -> vector<24x128xf32>
    %37 = arith.addf %33, %36 : vector<24x128xf32>
    %c0_20 = arith.constant 0 : index
    %c0_21 = arith.constant 0 : index
    %38 = vector.load %arg4[%c0_20, %c0_21] : memref<1x128xf32, #tpu.memory_space<vmem>>, vector<1x128xf32>
    %39 = vector.broadcast %38 : vector<1x128xf32> to vector<24x128xf32>
    %40 = arith.addf %37, %39 : vector<24x128xf32>
    %cst_22 = arith.constant 0.000000e+00 : f32
    %41 = vector.broadcast %cst_22 : f32 to vector<24x128xf32>
    %42 = arith.maximumf %40, %41 : vector<24x128xf32>
    %cst_23 = arith.constant 0.000000e+00 : f32
    %43 = vector.shape_cast %23 : vector<24x1xi1> to vector<24x1xi1>
    %44 = vector.broadcast %43 : vector<24x1xi1> to vector<24x128xi1>
    %45 = vector.broadcast %cst_23 : f32 to vector<24x128xf32>
    %46 = arith.select %44, %42, %45 : vector<24x128xi1>, vector<24x128xf32>
    %c0_24 = arith.constant 0 : index
    %c0_25 = arith.constant 0 : index
    %c0_26 = arith.constant 0 : index
    %47 = vector.load %arg5[%c0_24, %c0_25, %c0_26] : memref<3x128x128xf32, #tpu.memory_space<vmem>>, vector<1x128x128xf32>
    %48 = vector.shape_cast %47 : vector<1x128x128xf32> to vector<128x128xf32>
    %cst_27 = arith.constant dense<0.000000e+00> : vector<24x128xf32>
    %49 = tpu.matmul %46, %48, %cst_27 {dimension_numbers = #tpu.dot_dimension_numbers<[1], [0], [0], [1], [0, 0, 1, 1], [], []>} : vector<24x128xf32>, vector<128x128xf32>, vector<24x128xf32> -> vector<24x128xf32>
    %50 = vector.extract_strided_slice %49 {offsets = [0, 0], sizes = [16, 128], strides = [1, 1]} : vector<24x128xf32> to vector<16x128xf32>
    %51 = arith.addf %24, %50 : vector<16x128xf32>
    %c1_28 = arith.constant 1 : index
    %c0_29 = arith.constant 0 : index
    %c0_30 = arith.constant 0 : index
    %52 = vector.load %arg5[%c1_28, %c0_29, %c0_30] : memref<3x128x128xf32, #tpu.memory_space<vmem>>, vector<1x128x128xf32>
    %53 = vector.shape_cast %52 : vector<1x128x128xf32> to vector<128x128xf32>
    %cst_31 = arith.constant dense<0.000000e+00> : vector<24x128xf32>
    %54 = tpu.matmul %46, %53, %cst_31 {dimension_numbers = #tpu.dot_dimension_numbers<[1], [0], [0], [1], [0, 0, 1, 1], [], []>} : vector<24x128xf32>, vector<128x128xf32>, vector<24x128xf32> -> vector<24x128xf32>
    %55 = vector.extract_strided_slice %54 {offsets = [1, 0], sizes = [16, 128], strides = [1, 1]} : vector<24x128xf32> to vector<16x128xf32>
    %56 = arith.addf %51, %55 : vector<16x128xf32>
    %c2_32 = arith.constant 2 : index
    %c0_33 = arith.constant 0 : index
    %c0_34 = arith.constant 0 : index
    %57 = vector.load %arg5[%c2_32, %c0_33, %c0_34] : memref<3x128x128xf32, #tpu.memory_space<vmem>>, vector<1x128x128xf32>
    %58 = vector.shape_cast %57 : vector<1x128x128xf32> to vector<128x128xf32>
    %cst_35 = arith.constant dense<0.000000e+00> : vector<24x128xf32>
    %59 = tpu.matmul %46, %58, %cst_35 {dimension_numbers = #tpu.dot_dimension_numbers<[1], [0], [0], [1], [0, 0, 1, 1], [], []>} : vector<24x128xf32>, vector<128x128xf32>, vector<24x128xf32> -> vector<24x128xf32>
    %60 = vector.extract_strided_slice %59 {offsets = [2, 0], sizes = [16, 128], strides = [1, 1]} : vector<24x128xf32> to vector<16x128xf32>
    %61 = arith.addf %56, %60 : vector<16x128xf32>
    %c0_36 = arith.constant 0 : index
    %c0_37 = arith.constant 0 : index
    %62 = vector.load %arg6[%c0_36, %c0_37] : memref<1x128xf32, #tpu.memory_space<vmem>>, vector<1x128xf32>
    %63 = vector.broadcast %62 : vector<1x128xf32> to vector<16x128xf32>
    %64 = arith.addf %61, %63 : vector<16x128xf32>
    %c0_38 = arith.constant 0 : index
    %c0_39 = arith.constant 0 : index
    %c0_40 = arith.constant 0 : index
    %65 = vector.load %arg7[%c0_38, %c0_39, %c0_40] : memref<1x16x128xf32, #tpu.memory_space<vmem>>, vector<1x16x128xf32>
    %66 = vector.shape_cast %65 : vector<1x16x128xf32> to vector<16x128xf32>
    %67 = vector.shape_cast %64 : vector<16x128xf32> to vector<1x16x128xf32>
    tpu.vector_store %arg7[%c0_38, %c0_39, %c0_40], %67 {strides = array<i32>} : memref<1x16x128xf32, #tpu.memory_space<vmem>>, vector<1x16x128xf32>,
    return
  }
  func.func @transform_0(%arg0: i32, %arg1: i32) -> (i32, i32, i32) {
    %c0_i32 = arith.constant 0 : i32
    %c0_i32_0 = arith.constant 0 : i32
    %c0_i32_1 = arith.constant 0 : i32
    return %arg0, %c0_i32, %c0_i32_0 : i32, i32, i32
  }
  func.func @transform_1(%arg0: i32, %arg1: i32) -> (i32, i32, i32) {
    %c0_i32 = arith.constant 0 : i32
    %c0_i32_0 = arith.constant 0 : i32
    %c0_i32_1 = arith.constant 0 : i32
    %c0_i32_2 = arith.constant 0 : i32
    return %c0_i32, %c0_i32_0, %c0_i32_1 : i32, i32, i32
  }
  func.func @transform_2(%arg0: i32, %arg1: i32) -> (i32, i32) {
    %c0_i32 = arith.constant 0 : i32
    %c0_i32_0 = arith.constant 0 : i32
    %c0_i32_1 = arith.constant 0 : i32
    return %c0_i32, %c0_i32_0 : i32, i32
  }
  func.func @transform_3(%arg0: i32, %arg1: i32) -> (i32, i32, i32) {
    %c0_i32 = arith.constant 0 : i32
    %c0_i32_0 = arith.constant 0 : i32
    %c0_i32_1 = arith.constant 0 : i32
    %c0_i32_2 = arith.constant 0 : i32
    return %c0_i32, %c0_i32_0, %c0_i32_1 : i32, i32, i32
  }
  func.func @transform_4(%arg0: i32, %arg1: i32) -> (i32, i32) {
    %c0_i32 = arith.constant 0 : i32
    %c0_i32_0 = arith.constant 0 : i32
    %c0_i32_1 = arith.constant 0 : i32
    return %c0_i32, %c0_i32_0 : i32, i32
  }
  func.func @transform_5(%arg0: i32, %arg1: i32) -> (i32, i32, i32) {
    %c0_i32 = arith.constant 0 : i32
    %c0_i32_0 = arith.constant 0 : i32
    return %arg0, %arg1, %c0_i32 : i32, i32, i32
  }
}

</mosaic_0001>

<llo_original>
// kernel: tpu_custom_call.1
$region0: #{tpu_custom_call.1}
  #allocation0 [shape = 'u32[]', space=smem, size = 0x4, offset = 0x4, fixed_abs, tag = 'smem constant byte address 0x4 - core index']
  #allocation1 [shape = 'u32[144,128]{1,0:T(1,128)}', space=vmem, size = 0x12000, scoped, tag = 'internal scratch']
  %s0 = inlined_call_operand.vmem [shape: f32[2,26,128], index: 0, kind: input, shape index: {}]
  %s1 = inlined_call_operand.hbm [shape: f32[3,128,128], index: 1, kind: input, shape index: {}]
  %s2 = inlined_call_operand.vmem [shape: f32[1,128], index: 2, kind: input, shape index: {}]
  %s3 = inlined_call_operand.hbm [shape: f32[3,128,128], index: 3, kind: input, shape index: {}]
  %s4 = inlined_call_operand.vmem [shape: f32[1,128], index: 4, kind: input, shape index: {}]
  %s5 = inlined_call_operand.hbm [shape: f32[2,16,128], index: 5, kind: output, shape index: {}]
  %s6 = sld [smem:[#allocation0]]
  $region61: #{tpu_custom_call.1} parent=0
    _
  %s8 = ssub.s32 1, %s6
  %s9 = scalar_select 0, %s8, %s6
  $region1: #{tpu_custom_call.1} parent=0
    #allocation2 [shape = 'u8[196608]{0}', space=vmem, size = 0x30000, scoped, tag = 'input window, operand 1, single buffered']
    #allocation3 [shape = 's32[2]{0}', space=sflag, size = 0x8, scoped, tag = 'scoped memory for tpu_custom_call.1']
    #allocation4 [shape = 's32[2]{0}', space=sflag, size = 0x8, scoped, tag = 'scoped memory for tpu_custom_call.1']
    #allocation5 [shape = 'u8[196608]{0}', space=vmem, size = 0x30000, scoped, tag = 'input window, operand 3, single buffered']
    #allocation6 [shape = 's32[1]{0}', space=sflag, size = 0x4, scoped, tag = 'scoped memory for tpu_custom_call.1']
    #allocation7 [shape = 'u8[16384]{0}', space=vmem, size = 0x4000, scoped, tag = 'output window, operand 0']
    %10 = vsyncpa [#allocation3], 0
    %11 = vsyncpa [#allocation6], 0
    %12 = vsyncpa [#allocation4], 0
    %s13 = scalar_lea.sflag [#allocation4], 1
    %14 = vsyncpa %s13, 0
    loop: start=0, step=1, limit=4
    $region2: #{tpu_custom_call.1} parent=1 // loop_pre_header
      _
    $region3: #{tpu_custom_call.1} parent=1 // loop_header
      %s16 = sphi 0, %s20
      %p17 = scmp.ge.s32.totalorder %s16, 4
      %s23 = sphi 0, %s35
      %s24 = sphi 0, %s31
      %s25 = sphi 0, %s23
      %s26 = sphi 0, %s24
      %s27 = sphi 0, %s25
      %s28 = sphi 0, %s26
      %s38 = sphi 0, %s40
      %s41 = sphi 0, %s38
      %s42 = sphi 0, %s41
      %s58 = sphi 0, %s42
      %s62 = sphi 0, %s62
      %s64 = sphi 0, %s62
      %s65 = sphi 0, %s64
      %s79 = sphi 0, %s65
      %s83 = sphi 0, %s83
      %s85 = sphi 0, %s83
      %s86 = sphi 0, %s85
      %s100 = sphi 0, %s86
      %s104 = sphi 0, %s104
      %s106 = sphi 0, %s104
      %s107 = sphi 0, %s106
      %s121 = sphi 0, %s107
      %s125 = sphi 0, %s125
      %s127 = sphi 0, %s125
      %s128 = sphi 0, %s127
      %s142 = sphi 0, %s128
      %s150 = sphi 0, %s152
      %s153 = sphi 0, %s150
      %s154 = sphi 0, %s153
      %s170 = sphi 0, %s154
    $region4: #{tpu_custom_call.1} parent=1 // loop_header_branch
      %19 = sbr.rel (%p17) target = $region8
    $region5: #{tpu_custom_call.1} parent=1 // loop_body
      %s21 = ssub.s32 %s16, 1
      %s22 = ssub.s32 %s16, 2
      %s29 = sadd.s32 1, %s24
      %p30 = scmp.ge.s32.totalorder %s29, 1
      %s31 = scalar_select %p30, 0, %s29
      %s32 = sadd.s32 1, %s23
      %s33 = scalar_select %p30, %s32, %s23
      %p34 = scmp.ge.s32.totalorder %s33, 2
      %s35 = scalar_select %p34, 0, %s33
      %s36 = ssub.s32 %s23, %s35
      %p37 = scmp.eq.s32.totalorder %s36, 0
      %s39 = sadd.s32 %s38, 1
      %s40 = scalar_select %p37, %s38, %s39
      %p43 = pneg %p37
      %p44 = scmp.eq.s32.totalorder %s16, 1
      %p45 = por %p43, %p44
      %p46 = scmp.ne.s32.totalorder %s38, %s41
      %p47 = scmp.eq.s32.totalorder %s16, 0
      %p48 = por %p46, %p47
      %p49 = scmp.ne.s32.totalorder %s38, %s41
      %p50 = scmp.eq.s32.totalorder %s21, 1
      %p51 = por %p49, %p50
      %p52 = scmp.ne.s32.totalorder %s41, %s42
      %p53 = scmp.eq.s32.totalorder %s21, 0
      %p54 = por %p52, %p53
      %p55 = scmp.ne.s32.totalorder %s41, %s42
      %p56 = scmp.eq.s32.totalorder %s22, 1
      %p57 = por %p55, %p56
      %p59 = scmp.ne.s32.totalorder %s42, %s58
      %p60 = scmp.eq.s32.totalorder %s22, 0
      %p61 = por %p59, %p60
      %s63 = sadd.s32 %s62, 1
      %p66 = scmp.eq.s32.totalorder %s16, 1
      %p67 = scmp.ne.s32.totalorder %s62, %s64
      %p68 = scmp.eq.s32.totalorder %s16, 0
      %p69 = por %p67, %p68
      %p70 = scmp.ne.s32.totalorder %s62, %s64
      %p71 = scmp.eq.s32.totalorder %s21, 1
      %p72 = por %p70, %p71
      %p73 = scmp.ne.s32.totalorder %s64, %s65
      %p74 = scmp.eq.s32.totalorder %s21, 0
      %p75 = por %p73, %p74
      %p76 = scmp.ne.s32.totalorder %s64, %s65
      %p77 = scmp.eq.s32.totalorder %s22, 1
      %p78 = por %p76, %p77
      %p80 = scmp.ne.s32.totalorder %s65, %s79
      %p81 = scmp.eq.s32.totalorder %s22, 0
      %p82 = por %p80, %p81
      %s84 = sadd.s32 %s83, 1
      %p87 = scmp.eq.s32.totalorder %s16, 1
      %p88 = scmp.ne.s32.totalorder %s83, %s85
      %p89 = scmp.eq.s32.totalorder %s16, 0
      %p90 = por %p88, %p89
      %p91 = scmp.ne.s32.totalorder %s83, %s85
      %p92 = scmp.eq.s32.totalorder %s21, 1
      %p93 = por %p91, %p92
      %p94 = scmp.ne.s32.totalorder %s85, %s86
      %p95 = scmp.eq.s32.totalorder %s21, 0
      %p96 = por %p94, %p95
      %p97 = scmp.ne.s32.totalorder %s85, %s86
      %p98 = scmp.eq.s32.totalorder %s22, 1
      %p99 = por %p97, %p98
      %p101 = scmp.ne.s32.totalorder %s86, %s100
      %p102 = scmp.eq.s32.totalorder %s22, 0
      %p103 = por %p101, %p102
      %s105 = sadd.s32 %s104, 1
      %p108 = scmp.eq.s32.totalorder %s16, 1
      %p109 = scmp.ne.s32.totalorder %s104, %s106
      %p110 = scmp.eq.s32.totalorder %s16, 0
      %p111 = por %p109, %p110
      %p112 = scmp.ne.s32.totalorder %s104, %s106
      %p113 = scmp.eq.s32.totalorder %s21, 1
      %p114 = por %p112, %p113
      %p115 = scmp.ne.s32.totalorder %s106, %s107
      %p116 = scmp.eq.s32.totalorder %s21, 0
      %p117 = por %p115, %p116
      %p118 = scmp.ne.s32.totalorder %s106, %s107
      %p119 = scmp.eq.s32.totalorder %s22, 1
      %p120 = por %p118, %p119
      %p122 = scmp.ne.s32.totalorder %s107, %s121
      %p123 = scmp.eq.s32.totalorder %s22, 0
      %p124 = por %p122, %p123
      %s126 = sadd.s32 %s125, 1
      %p129 = scmp.eq.s32.totalorder %s16, 1
      %p130 = scmp.ne.s32.totalorder %s125, %s127
      %p131 = scmp.eq.s32.totalorder %s16, 0
      %p132 = por %p130, %p131
      %p133 = scmp.ne.s32.totalorder %s125, %s127
      %p134 = scmp.eq.s32.totalorder %s21, 1
      %p135 = por %p133, %p134
      %p136 = scmp.ne.s32.totalorder %s127, %s128
      %p137 = scmp.eq.s32.totalorder %s21, 0
      %p138 = por %p136, %p137
      %p139 = scmp.ne.s32.totalorder %s127, %s128
      %p140 = scmp.eq.s32.totalorder %s22, 1
      %p141 = por %p139, %p140
      %p143 = scmp.ne.s32.totalorder %s128, %s142
      %p144 = scmp.eq.s32.totalorder %s22, 0
      %p145 = por %p143, %p144
      %s146 = ssub.s32 %s23, %s35
      %s147 = ssub.s32 %s24, %s31
      %s148 = sor.u32 %s146, %s147
      %p149 = scmp.eq.s32.totalorder %s148, 0
      %s151 = sadd.s32 %s150, 1
      %s152 = scalar_select %p149, %s150, %s151
      %p155 = pneg %p149
      %p156 = scmp.eq.s32.totalorder %s16, 1
      %p157 = por %p155, %p156
      %p158 = scmp.ne.s32.totalorder %s150, %s153
      %p159 = scmp.eq.s32.totalorder %s16, 0
      %p160 = por %p158, %p159
      %p161 = scmp.ne.s32.totalorder %s150, %s153
      %p162 = scmp.eq.s32.totalorder %s21, 1
      %p163 = por %p161, %p162
      %p164 = scmp.ne.s32.totalorder %s153, %s154
      %p165 = scmp.eq.s32.totalorder %s21, 0
      %p166 = por %p164, %p165
      %p167 = scmp.ne.s32.totalorder %s153, %s154
      %p168 = scmp.eq.s32.totalorder %s22, 1
      %p169 = por %p167, %p168
      %p171 = scmp.ne.s32.totalorder %s154, %s170
      %p172 = scmp.eq.s32.totalorder %s22, 0
      %p173 = por %p171, %p172
      %p174 = scmp.le.s32.totalorder 1, %s16
      %p175 = scmp.lt.s32.totalorder %s16, 3
      %p176 = pnand %p174, %p175
      %p177 = pneg %p176
      // Predicated region
      $region9: #{tpu_custom_call.1} parent=5 // pred_check
        _
      $region10: #{tpu_custom_call.1} parent=5 // pred_check_branch
        %179 = sbr.rel (%p176) target = $region12
      $region11: #{tpu_custom_call.1} parent=5 // pred_region
        %s180 = ssub.s32 %s16, 1
        // Predicated region
        $region13: #{tpu_custom_call.1} parent=11 // pred_check
          %p181 = pneg %p75
        $region14: #{tpu_custom_call.1} parent=11 // pred_check_branch
          %183 = sbr.rel (%p181) target = $region16
        $region15: #{tpu_custom_call.1} parent=11 // pred_region
          %s185 = ssub.s32 6144, 6144
          %186 = vsyncadd [#allocation3], %s185
          %s187 = sshll.u32 [#allocation2], 4
          %s188 = int_to_ptr.vmem [resolvable:$true] %s187
          %193 = dma.hbm_to_vmem [thread:$0]  %s1, 6144, %s188, [#allocation3], 128, 128, 8
        $region16: #{tpu_custom_call.1} parent=11 // pred_fallthru
          _
        // Predicated region
        $region17: #{tpu_custom_call.1} parent=11 // pred_check
          %p194 = pneg %p96
        $region18: #{tpu_custom_call.1} parent=11 // pred_check_branch
          %196 = sbr.rel (%p194) target = $region20
        $region19: #{tpu_custom_call.1} parent=11 // pred_region
          _
        $region20: #{tpu_custom_call.1} parent=11 // pred_fallthru
          _
        // Predicated region
        $region21: #{tpu_custom_call.1} parent=11 // pred_check
          %p197 = pneg %p117
        $region22: #{tpu_custom_call.1} parent=11 // pred_check_branch
          %199 = sbr.rel (%p197) target = $region24
        $region23: #{tpu_custom_call.1} parent=11 // pred_region
          %s201 = ssub.s32 6144, 6144
          %202 = vsyncadd [#allocation6], %s201
          %s203 = sshll.u32 [#allocation5], 4
          %s204 = int_to_ptr.vmem [resolvable:$true] %s203
          %209 = dma.hbm_to_vmem [thread:$0]  %s3, 6144, %s204, [#allocation6], 128, 128, 8
        $region24: #{tpu_custom_call.1} parent=11 // pred_fallthru
          _
        // Predicated region
        $region25: #{tpu_custom_call.1} parent=11 // pred_check
          %p210 = pneg %p138
        $region26: #{tpu_custom_call.1} parent=11 // pred_check_branch
          %212 = sbr.rel (%p210) target = $region28
        $region27: #{tpu_custom_call.1} parent=11 // pred_region
          _
        $region28: #{tpu_custom_call.1} parent=11 // pred_fallthru
          _
      $region12: #{tpu_custom_call.1} parent=5 // pred_fallthru
        _
      %p213 = scmp.lt.s32.totalorder %s16, 2
      // Predicated region
      $region29: #{tpu_custom_call.1} parent=5 // pred_check
        %p214 = pneg %p213
      $region30: #{tpu_custom_call.1} parent=5 // pred_check_branch
        %216 = sbr.rel (%p214) target = $region32
      $region31: #{tpu_custom_call.1} parent=5 // pred_region
        // Predicated region
        $region33: #{tpu_custom_call.1} parent=31 // pred_check
          %p217 = pneg %p48
        $region34: #{tpu_custom_call.1} parent=31 // pred_check_branch
          %219 = sbr.rel (%p217) target = $region36
        $region35: #{tpu_custom_call.1} parent=31 // pred_region
          %p220 = scmp.lt.s32.totalorder %s23, 1
          %s221 = scalar_select %p220, %s23, 1
          %s222 = smul.addr %s221, 4
          %s223 = smul.addr %s222, 8
          %s224 = scalar_lea.vmem %s0, %s223
        $region36: #{tpu_custom_call.1} parent=31 // pred_fallthru
          _
      $region32: #{tpu_custom_call.1} parent=5 // pred_fallthru
        _
      %p225 = scmp.le.s32.totalorder 1, %s16
      %p226 = scmp.lt.s32.totalorder %s16, 3
      %p227 = pnand %p225, %p226
      %p228 = pneg %p227
      // Predicated region
      $region37: #{tpu_custom_call.1} parent=5 // pred_check
        _
      $region38: #{tpu_custom_call.1} parent=5 // pred_check_branch
        %230 = sbr.rel (%p227) target = $region40
      $region39: #{tpu_custom_call.1} parent=5 // pred_region
        %s231 = ssub.s32 %s16, 1
        // Predicated region
        $region41: #{tpu_custom_call.1} parent=39 // pred_check
          %p232 = pneg %p75
        $region42: #{tpu_custom_call.1} parent=39 // pred_check_branch
          %234 = sbr.rel (%p232) target = $region44
        $region43: #{tpu_custom_call.1} parent=39 // pred_region
          %235 = dma.done [#allocation3], 6144
        $region44: #{tpu_custom_call.1} parent=39 // pred_fallthru
          _
        // Predicated region
        $region45: #{tpu_custom_call.1} parent=39 // pred_check
          %p236 = pneg %p117
        $region46: #{tpu_custom_call.1} parent=39 // pred_check_branch
          %238 = sbr.rel (%p236) target = $region48
        $region47: #{tpu_custom_call.1} parent=39 // pred_region
          %239 = dma.done [#allocation6], 6144
        $region48: #{tpu_custom_call.1} parent=39 // pred_fallthru
          _
        %p240 = scmp.lt.s32.totalorder %s25, 1
        %s241 = scalar_select %p240, %s25, 1
        %s242 = smul.addr %s241, 4
        %s243 = smul.addr %s242, 8
        %s244 = scalar_lea.vmem %s0, %s243
        %p245 = pneg %p54
        %p246 = pneg %p51
        %p247 = pneg %p75
        %p248 = pneg %p72
        %p249 = pneg %p96
        %p250 = pneg %p93
        %p251 = pneg %p117
        %p252 = pneg %p114
        %p253 = pneg %p138
        %p254 = pneg %p135
        %p255 = pneg %p166
        %p256 = pneg %p163
        %s257 = sand.u32 %s153, 1
        %s258 = scalar_lea.sflag [#allocation4], %s257
        %s259 = sand.u32 %s153, 1
        %s260 = smul.addr %s259, 16
        %s261 = scalar_lea.vmem [#allocation7], %s260
        %p262 = scmp.lt.s32.totalorder %s25, 1
        %s263 = scalar_select %p262, %s25, 1
        %s264 = smul.addr %s263, 4
        %s265 = smul.addr %s264, 8
        %s266 = scalar_lea.vmem %s0, %s265
        %s267 = smul.u32 2, %s26
        %s268 = smul.u32 %s26, 16
        %s269 = scalar_lea.vmem %s266, %s268
        %v270 = vld [vmem:[%s269] sm:$0xff]
        %v271 = vld [vmem:[%s269 + $0x8] sm:$0xff]
        %v272 = vld [vmem:[%s269 + $0x10] sm:$0xff]
        %s273 = sadd.s32 %s268, 1
        %s274 = scalar_lea.vmem %s266, %s273
        %v275 = vld [vmem:[%s274] sm:$0xff]
        %v276 = vld [vmem:[%s274 + $0x8] sm:$0xff]
        %v277 = vld [vmem:[%s274 + $0x10] sm:$0xff]
        %s278 = sadd.s32 %s268, 2
        %s279 = scalar_lea.vmem %s266, %s278
        %v280 = vld [vmem:[%s279] sm:$0xff]
        %v281 = vld [vmem:[%s279 + $0x8] sm:$0xff]
        %v282 = vld [vmem:[%s279 + $0x10] sm:$0xff]
        %v283 = vlaneseq
        %v284 = vshrl.u32 %v283, 7
        %v285 = vadd.s32 %v284, 8
        %v286 = vadd.s32 %v284, 16
        %s287 = ssub.s32 %s268, 1
        %v288 = vstv %s287
        %v289 = vadd.s32 %v288, %v284
        %v290 = vadd.s32 %v288, %v285
        %v291 = vadd.s32 %v288, %v286
        %vm292 = vcmp.ge.s32.totalorder %v289, 0
        %vm293 = vcmp.ge.s32.totalorder %v290, 0
        %vm294 = vcmp.ge.s32.totalorder %v291, 0
        %vm295 = vcmp.lt.s32.totalorder %v289, 16
        %vm296 = vcmp.lt.s32.totalorder %v290, 16
        %vm297 = vcmp.lt.s32.totalorder %v291, 16
        %vm298 = vmand %vm292, %vm295
        %vm299 = vmand %vm293, %vm296
        %vm300 = vmand %vm294, %vm297
        %v301 = vld [vmem:[#allocation2] sm:$0xff]
        %v302 = vld [vmem:[#allocation2 + $0x8] sm:$0xff]
        %v303 = vld [vmem:[#allocation2 + $0x10] sm:$0xff]
        %v304 = vld [vmem:[#allocation2 + $0x18] sm:$0xff]
        %v305 = vld [vmem:[#allocation2 + $0x20] sm:$0xff]
        %v306 = vld [vmem:[#allocation2 + $0x28] sm:$0xff]
        %v307 = vld [vmem:[#allocation2 + $0x30] sm:$0xff]
        %v308 = vld [vmem:[#allocation2 + $0x38] sm:$0xff]
        %v309 = vld [vmem:[#allocation2 + $0x40] sm:$0xff]
        %v310 = vld [vmem:[#allocation2 + $0x48] sm:$0xff]
        %v311 = vld [vmem:[#allocation2 + $0x50] sm:$0xff]
        %v312 = vld [vmem:[#allocation2 + $0x58] sm:$0xff]
        %v313 = vld [vmem:[#allocation2 + $0x60] sm:$0xff]
        %v314 = vld [vmem:[#allocation2 + $0x68] sm:$0xff]
        %v315 = vld [vmem:[#allocation2 + $0x70] sm:$0xff]
        %v316 = vld [vmem:[#allocation2 + $0x78] sm:$0xff]
        %s317 = scalar_lea.vmem [#allocation2], 128
        %v318 = vld [vmem:[%s317] sm:$0xff]
        %v319 = vld [vmem:[%s317 + $0x8] sm:$0xff]
        %v320 = vld [vmem:[%s317 + $0x10] sm:$0xff]
        %v321 = vld [vmem:[%s317 + $0x18] sm:$0xff]
        %v322 = vld [vmem:[%s317 + $0x20] sm:$0xff]
        %v323 = vld [vmem:[%s317 + $0x28] sm:$0xff]
        %v324 = vld [vmem:[%s317 + $0x30] sm:$0xff]
        %v325 = vld [vmem:[%s317 + $0x38] sm:$0xff]
        %v326 = vld [vmem:[%s317 + $0x40] sm:$0xff]
        %v327 = vld [vmem:[%s317 + $0x48] sm:$0xff]
        %v328 = vld [vmem:[%s317 + $0x50] sm:$0xff]
        %v329 = vld [vmem:[%s317 + $0x58] sm:$0xff]
        %v330 = vld [vmem:[%s317 + $0x60] sm:$0xff]
        %v331 = vld [vmem:[%s317 + $0x68] sm:$0xff]
        %v332 = vld [vmem:[%s317 + $0x70] sm:$0xff]
        %v333 = vld [vmem:[%s317 + $0x78] sm:$0xff]
        %334 = vmatprep.subr.mxu0 0.0
        %335 = vmatpush1.msra.mxu0 %v318
        %336 = vmatprep.subr.mxu0 0.0
        %337 = vmatpush1.msra.mxu0 %v319
        %338 = vmatprep.subr.mxu0 0.0
        %339 = vmatpush1.msra.mxu0 %v320
        %340 = vmatprep.subr.mxu0 0.0
        %341 = vmatpush1.msra.mxu0 %v321
        %342 = vmatprep.subr.mxu0 0.0
        %343 = vmatpush1.msra.mxu0 %v322
        %344 = vmatprep.subr.mxu0 0.0
        %345 = vmatpush1.msra.mxu0 %v323
        %346 = vmatprep.subr.mxu0 0.0
        %347 = vmatpush1.msra.mxu0 %v324
        %348 = vmatprep.subr.mxu0 0.0
        %349 = vmatpush1.msra.mxu0 %v325
        %350 = vmatprep.subr.mxu0 0.0
        %351 = vmatpush1.msra.mxu0 %v326
        %352 = vmatprep.subr.mxu0 0.0
        %353 = vmatpush1.msra.mxu0 %v327
        %354 = vmatprep.subr.mxu0 0.0
        %355 = vmatpush1.msra.mxu0 %v328
        %356 = vmatprep.subr.mxu0 0.0
        %357 = vmatpush1.msra.mxu0 %v329
        %358 = vmatprep.subr.mxu0 0.0
        %359 = vmatpush1.msra.mxu0 %v330
        %360 = vmatprep.subr.mxu0 0.0
        %361 = vmatpush1.msra.mxu0 %v331
        %362 = vmatprep.subr.mxu0 0.0
        %363 = vmatpush1.msra.mxu0 %v332
        %364 = vmatprep.subr.mxu0 0.0
        %365 = vmatpush1.msra.mxu0 %v333
        %366 = vmatprep.subr.mxu0 0.0
        %367 = vmatpush1.msra.mxu0 0.0
        %368 = vmatprep.subr.mxu0 0.0
        %369 = vmatpush1.msra.mxu0 0.0
        %370 = vmatprep.subr.mxu0 0.0
        %371 = vmatpush1.msra.mxu0 0.0
        %372 = vmatprep.subr.mxu0 0.0
        %373 = vmatpush1.msra.mxu0 0.0
        %374 = vmatprep.subr.mxu0 0.0
        %375 = vmatpush1.msra.mxu0 0.0
        %376 = vmatprep.subr.mxu0 0.0
        %377 = vmatpush1.msra.mxu0 0.0
        %378 = vmatprep.subr.mxu0 0.0
        %379 = vmatpush1.msra.mxu0 0.0
        %380 = vmatprep.subr.mxu0 0.0
        %381 = vmatpush1.msra.mxu0 0.0
        %382 = vmatprep.subr.mxu0 0.0
        %383 = vmatpush1.msra.mxu0 0.0
        %384 = vmatprep.subr.mxu0 0.0
        %385 = vmatpush1.msra.mxu0 0.0
        %386 = vmatprep.subr.mxu0 0.0
        %387 = vmatpush1.msra.mxu0 0.0
        %388 = vmatprep.subr.mxu0 0.0
        %389 = vmatpush1.msra.mxu0 0.0
        %390 = vmatprep.subr.mxu0 0.0
        %391 = vmatpush1.msra.mxu0 0.0
        %392 = vmatprep.subr.mxu0 0.0
        %393 = vmatpush1.msra.mxu0 0.0
        %394 = vmatprep.subr.mxu0 0.0
        %395 = vmatpush1.msra.mxu0 0.0
        %396 = vmatprep.subr.mxu0 0.0
        %397 = vmatpush1.msra.mxu0 0.0
        %398 = vmatprep.mubr.f32.mxu0 0.0
        %399 = vmatmul.mubr.f32.gmra.mrb[0].mxu0 %v275
        %v400 = vpop.f32.mrb[0].mxu0
        %v401 = vadd.f32 0.0, %v400
        %v402 = vpop.f32.mrb[0].mxu0
        %403 = vmatprep.mubr.f32.mxu0 0.0
        %404 = vmatmul.mubr.f32.gmra.mrb[0].mxu0 %v276
        %v405 = vpop.f32.mrb[0].mxu0
        %v406 = vadd.f32 0.0, %v405
        %v407 = vpop.f32.mrb[0].mxu0
        %408 = vmatprep.mubr.f32.mxu0 0.0
        %409 = vmatmul.mubr.f32.gmra.mrb[0].mxu0 %v277
        %v410 = vpop.f32.mrb[0].mxu0
        %v411 = vadd.f32 0.0, %v410
        %v412 = vpop.f32.mrb[0].mxu0
        %413 = vdwg.mxu0
        %414 = vmatprep.subr.mxu0 0.0
        %415 = vmatpush1.msra.mxu0 %v301
        %416 = vmatprep.subr.mxu0 0.0
        %417 = vmatpush1.msra.mxu0 %v302
        %418 = vmatprep.subr.mxu0 0.0
        %419 = vmatpush1.msra.mxu0 %v303
        %420 = vmatprep.subr.mxu0 0.0
        %421 = vmatpush1.msra.mxu0 %v304
        %422 = vmatprep.subr.mxu0 0.0
        %423 = vmatpush1.msra.mxu0 %v305
        %424 = vmatprep.subr.mxu0 0.0
        %425 = vmatpush1.msra.mxu0 %v306
        %426 = vmatprep.subr.mxu0 0.0
        %427 = vmatpush1.msra.mxu0 %v307
        %428 = vmatprep.subr.mxu0 0.0
        %429 = vmatpush1.msra.mxu0 %v308
        %430 = vmatprep.subr.mxu0 0.0
        %431 = vmatpush1.msra.mxu0 %v309
        %432 = vmatprep.subr.mxu0 0.0
        %433 = vmatpush1.msra.mxu0 %v310
        %434 = vmatprep.subr.mxu0 0.0
        %435 = vmatpush1.msra.mxu0 %v311
        %436 = vmatprep.subr.mxu0 0.0
        %437 = vmatpush1.msra.mxu0 %v312
        %438 = vmatprep.subr.mxu0 0.0
        %439 = vmatpush1.msra.mxu0 %v313
        %440 = vmatprep.subr.mxu0 0.0
        %441 = vmatpush1.msra.mxu0 %v314
        %442 = vmatprep.subr.mxu0 0.0
        %443 = vmatpush1.msra.mxu0 %v315
        %444 = vmatprep.subr.mxu0 0.0
        %445 = vmatpush1.msra.mxu0 %v316
        %446 = vmatprep.subr.mxu0 0.0
        %447 = vmatpush1.msra.mxu0 0.0
        %448 = vmatprep.subr.mxu0 0.0
        %449 = vmatpush1.msra.mxu0 0.0
        %450 = vmatprep.subr.mxu0 0.0
        %451 = vmatpush1.msra.mxu0 0.0
        %452 = vmatprep.subr.mxu0 0.0
        %453 = vmatpush1.msra.mxu0 0.0
        %454 = vmatprep.subr.mxu0 0.0
        %455 = vmatpush1.msra.mxu0 0.0
        %456 = vmatprep.subr.mxu0 0.0
        %457 = vmatpush1.msra.mxu0 0.0
        %458 = vmatprep.subr.mxu0 0.0
        %459 = vmatpush1.msra.mxu0 0.0
        %460 = vmatprep.subr.mxu0 0.0
        %461 = vmatpush1.msra.mxu0 0.0
        %462 = vmatprep.subr.mxu0 0.0
        %463 = vmatpush1.msra.mxu0 0.0
        %464 = vmatprep.subr.mxu0 0.0
        %465 = vmatpush1.msra.mxu0 0.0
        %466 = vmatprep.subr.mxu0 0.0
        %467 = vmatpush1.msra.mxu0 0.0
        %468 = vmatprep.subr.mxu0 0.0
        %469 = vmatpush1.msra.mxu0 0.0
        %470 = vmatprep.subr.mxu0 0.0
        %471 = vmatpush1.msra.mxu0 0.0
        %472 = vmatprep.subr.mxu0 0.0
        %473 = vmatpush1.msra.mxu0 0.0
        %474 = vmatprep.subr.mxu0 0.0
        %475 = vmatpush1.msra.mxu0 0.0
        %476 = vmatprep.subr.mxu0 0.0
        %477 = vmatpush1.msra.mxu0 0.0
        %478 = vmatprep.mubr.f32.mxu0 0.0
        %479 = vmatmul.mubr.f32.gmra.mrb[0].mxu0 %v270
        %v480 = vpop.f32.mrb[0].mxu0
        %v481 = vadd.f32 %v401, %v480
        %v482 = vpop.f32.mrb[0].mxu0
        %483 = vmatprep.mubr.f32.mxu0 0.0
        %484 = vmatmul.mubr.f32.gmra.mrb[0].mxu0 %v271
        %v485 = vpop.f32.mrb[0].mxu0
        %v486 = vadd.f32 %v406, %v485
        %v487 = vpop.f32.mrb[0].mxu0
        %488 = vmatprep.mubr.f32.mxu0 0.0
        %489 = vmatmul.mubr.f32.gmra.mrb[0].mxu0 %v272
        %v490 = vpop.f32.mrb[0].mxu0
        %v491 = vadd.f32 %v411, %v490
        %v492 = vpop.f32.mrb[0].mxu0
        %493 = vdwg.mxu0
        %s494 = scalar_lea.vmem [#allocation2], 256
        %v495 = vld [vmem:[%s494] sm:$0xff]
        %v496 = vld [vmem:[%s494 + $0x8] sm:$0xff]
        %v497 = vld [vmem:[%s494 + $0x10] sm:$0xff]
        %v498 = vld [vmem:[%s494 + $0x18] sm:$0xff]
        %v499 = vld [vmem:[%s494 + $0x20] sm:$0xff]
        %v500 = vld [vmem:[%s494 + $0x28] sm:$0xff]
        %v501 = vld [vmem:[%s494 + $0x30] sm:$0xff]
        %v502 = vld [vmem:[%s494 + $0x38] sm:$0xff]
        %v503 = vld [vmem:[%s494 + $0x40] sm:$0xff]
        %v504 = vld [vmem:[%s494 + $0x48] sm:$0xff]
        %v505 = vld [vmem:[%s494 + $0x50] sm:$0xff]
        %v506 = vld [vmem:[%s494 + $0x58] sm:$0xff]
        %v507 = vld [vmem:[%s494 + $0x60] sm:$0xff]
        %v508 = vld [vmem:[%s494 + $0x68] sm:$0xff]
        %v509 = vld [vmem:[%s494 + $0x70] sm:$0xff]
        %v510 = vld [vmem:[%s494 + $0x78] sm:$0xff]
        %511 = vmatprep.subr.mxu0 0.0
        %512 = vmatpush1.msra.mxu0 %v495
        %513 = vmatprep.subr.mxu0 0.0
        %514 = vmatpush1.msra.mxu0 %v496
        %515 = vmatprep.subr.mxu0 0.0
        %516 = vmatpush1.msra.mxu0 %v497
        %517 = vmatprep.subr.mxu0 0.0
        %518 = vmatpush1.msra.mxu0 %v498
        %519 = vmatprep.subr.mxu0 0.0
        %520 = vmatpush1.msra.mxu0 %v499
        %521 = vmatprep.subr.mxu0 0.0
        %522 = vmatpush1.msra.mxu0 %v500
        %523 = vmatprep.subr.mxu0 0.0
        %524 = vmatpush1.msra.mxu0 %v501
        %525 = vmatprep.subr.mxu0 0.0
        %526 = vmatpush1.msra.mxu0 %v502
        %527 = vmatprep.subr.mxu0 0.0
        %528 = vmatpush1.msra.mxu0 %v503
        %529 = vmatprep.subr.mxu0 0.0
        %530 = vmatpush1.msra.mxu0 %v504
        %531 = vmatprep.subr.mxu0 0.0
        %532 = vmatpush1.msra.mxu0 %v505
        %533 = vmatprep.subr.mxu0 0.0
        %534 = vmatpush1.msra.mxu0 %v506
        %535 = vmatprep.subr.mxu0 0.0
        %536 = vmatpush1.msra.mxu0 %v507
        %537 = vmatprep.subr.mxu0 0.0
        %538 = vmatpush1.msra.mxu0 %v508
        %539 = vmatprep.subr.mxu0 0.0
        %540 = vmatpush1.msra.mxu0 %v509
        %541 = vmatprep.subr.mxu0 0.0
        %542 = vmatpush1.msra.mxu0 %v510
        %543 = vmatprep.subr.mxu0 0.0
        %544 = vmatpush1.msra.mxu0 0.0
        %545 = vmatprep.subr.mxu0 0.0
        %546 = vmatpush1.msra.mxu0 0.0
        %547 = vmatprep.subr.mxu0 0.0
        %548 = vmatpush1.msra.mxu0 0.0
        %549 = vmatprep.subr.mxu0 0.0
        %550 = vmatpush1.msra.mxu0 0.0
        %551 = vmatprep.subr.mxu0 0.0
        %552 = vmatpush1.msra.mxu0 0.0
        %553 = vmatprep.subr.mxu0 0.0
        %554 = vmatpush1.msra.mxu0 0.0
        %555 = vmatprep.subr.mxu0 0.0
        %556 = vmatpush1.msra.mxu0 0.0
        %557 = vmatprep.subr.mxu0 0.0
        %558 = vmatpush1.msra.mxu0 0.0
        %559 = vmatprep.subr.mxu0 0.0
        %560 = vmatpush1.msra.mxu0 0.0
        %561 = vmatprep.subr.mxu0 0.0
        %562 = vmatpush1.msra.mxu0 0.0
        %563 = vmatprep.subr.mxu0 0.0
        %564 = vmatpush1.msra.mxu0 0.0
        %565 = vmatprep.subr.mxu0 0.0
        %566 = vmatpush1.msra.mxu0 0.0
        %567 = vmatprep.subr.mxu0 0.0
        %568 = vmatpush1.msra.mxu0 0.0
        %569 = vmatprep.subr.mxu0 0.0
        %570 = vmatpush1.msra.mxu0 0.0
        %571 = vmatprep.subr.mxu0 0.0
        %572 = vmatpush1.msra.mxu0 0.0
        %573 = vmatprep.subr.mxu0 0.0
        %574 = vmatpush1.msra.mxu0 0.0
        %575 = vmatprep.mubr.f32.mxu0 0.0
        %576 = vmatmul.mubr.f32.gmra.mrb[0].mxu0 %v280
        %v577 = vpop.f32.mrb[0].mxu0
        %v578 = vadd.f32 0.0, %v577
        %v579 = vpop.f32.mrb[0].mxu0
        %580 = vmatprep.mubr.f32.mxu0 0.0
        %581 = vmatmul.mubr.f32.gmra.mrb[0].mxu0 %v281
        %v582 = vpop.f32.mrb[0].mxu0
        %v583 = vadd.f32 0.0, %v582
        %v584 = vpop.f32.mrb[0].mxu0
        %585 = vmatprep.mubr.f32.mxu0 0.0
        %586 = vmatmul.mubr.f32.gmra.mrb[0].mxu0 %v282
        %v587 = vpop.f32.mrb[0].mxu0
        %v588 = vadd.f32 0.0, %v587
        %v589 = vpop.f32.mrb[0].mxu0
        %590 = vdwg.mxu0
        %v591 = vadd.f32 %v481, %v578
        %v592 = vadd.f32 %v486, %v583
        %v593 = vadd.f32 %v491, %v588
        %v594 = vld [vmem:[%s2] sm:$0x1]
        %v596 = vlaneseq
        %v597 = vshrl.u32 %v596, 7
        %v598 = vsub.s32 0, %v597
        %v599 = vrot.slane %v594, %v598
        %v601 = vadd.f32 %v591, %v599
        %v602 = vadd.f32 %v592, %v599
        %v603 = vadd.f32 %v593, %v599
        %v604 = vmax.f32 %v601, 0.0
        %v605 = vmax.f32 %v602, 0.0
        %v606 = vmax.f32 %v603, 0.0
        %v607 = vsel %vm298, 1, 0
        %v608 = vsel %vm299, 1, 0
        %v609 = vsel %vm300, 1, 0
        %vm610 = vcmp.eq.s32.totalorder %v607, 1
        %vm611 = vcmp.eq.s32.totalorder %v608, 1
        %vm612 = vcmp.eq.s32.totalorder %v609, 1
        %v613 = vsel %vm610, %v604, 0.0
        %v614 = vsel %vm611, %v605, 0.0
        %v615 = vsel %vm612, %v606, 0.0
        %v616 = vld [vmem:[#allocation5] sm:$0xff]
        %v617 = vld [vmem:[#allocation5 + $0x8] sm:$0xff]
        %v618 = vld [vmem:[#allocation5 + $0x10] sm:$0xff]
        %v619 = vld [vmem:[#allocation5 + $0x18] sm:$0xff]
        %v620 = vld [vmem:[#allocation5 + $0x20] sm:$0xff]
        %v621 = vld [vmem:[#allocation5 + $0x28] sm:$0xff]
        %v622 = vld [vmem:[#allocation5 + $0x30] sm:$0xff]
        %v623 = vld [vmem:[#allocation5 + $0x38] sm:$0xff]
        %v624 = vld [vmem:[#allocation5 + $0x40] sm:$0xff]
        %v625 = vld [vmem:[#allocation5 + $0x48] sm:$0xff]
        %v626 = vld [vmem:[#allocation5 + $0x50] sm:$0xff]
        %v627 = vld [vmem:[#allocation5 + $0x58] sm:$0xff]
        %v628 = vld [vmem:[#allocation5 + $0x60] sm:$0xff]
        %v629 = vld [vmem:[#allocation5 + $0x68] sm:$0xff]
        %v630 = vld [vmem:[#allocation5 + $0x70] sm:$0xff]
        %v631 = vld [vmem:[#allocation5 + $0x78] sm:$0xff]
        %632 = vmatprep.subr.mxu0 0.0
        %633 = vmatpush1.msra.mxu0 %v616
        %634 = vmatprep.subr.mxu0 0.0
        %635 = vmatpush1.msra.mxu0 %v617
        %636 = vmatprep.subr.mxu0 0.0
        %637 = vmatpush1.msra.mxu0 %v618
        %638 = vmatprep.subr.mxu0 0.0
        %639 = vmatpush1.msra.mxu0 %v619
        %640 = vmatprep.subr.mxu0 0.0
        %641 = vmatpush1.msra.mxu0 %v620
        %642 = vmatprep.subr.mxu0 0.0
        %643 = vmatpush1.msra.mxu0 %v621
        %644 = vmatprep.subr.mxu0 0.0
        %645 = vmatpush1.msra.mxu0 %v622
        %646 = vmatprep.subr.mxu0 0.0
        %647 = vmatpush1.msra.mxu0 %v623
        %648 = vmatprep.subr.mxu0 0.0
        %649 = vmatpush1.msra.mxu0 %v624
        %650 = vmatprep.subr.mxu0 0.0
        %651 = vmatpush1.msra.mxu0 %v625
        %652 = vmatprep.subr.mxu0 0.0
        %653 = vmatpush1.msra.mxu0 %v626
        %654 = vmatprep.subr.mxu0 0.0
        %655 = vmatpush1.msra.mxu0 %v627
        %656 = vmatprep.subr.mxu0 0.0
        %657 = vmatpush1.msra.mxu0 %v628
        %658 = vmatprep.subr.mxu0 0.0
        %659 = vmatpush1.msra.mxu0 %v629
        %660 = vmatprep.subr.mxu0 0.0
        %661 = vmatpush1.msra.mxu0 %v630
        %662 = vmatprep.subr.mxu0 0.0
        %663 = vmatpush1.msra.mxu0 %v631
        %664 = vmatprep.subr.mxu0 0.0
        %665 = vmatpush1.msra.mxu0 0.0
        %666 = vmatprep.subr.mxu0 0.0
        %667 = vmatpush1.msra.mxu0 0.0
        %668 = vmatprep.subr.mxu0 0.0
        %669 = vmatpush1.msra.mxu0 0.0
        %670 = vmatprep.subr.mxu0 0.0
        %671 = vmatpush1.msra.mxu0 0.0
        %672 = vmatprep.subr.mxu0 0.0
        %673 = vmatpush1.msra.mxu0 0.0
        %674 = vmatprep.subr.mxu0 0.0
        %675 = vmatpush1.msra.mxu0 0.0
        %676 = vmatprep.subr.mxu0 0.0
        %677 = vmatpush1.msra.mxu0 0.0
        %678 = vmatprep.subr.mxu0 0.0
        %679 = vmatpush1.msra.mxu0 0.0
        %680 = vmatprep.subr.mxu0 0.0
        %681 = vmatpush1.msra.mxu0 0.0
        %682 = vmatprep.subr.mxu0 0.0
        %683 = vmatpush1.msra.mxu0 0.0
        %684 = vmatprep.subr.mxu0 0.0
        %685 = vmatpush1.msra.mxu0 0.0
        %686 = vmatprep.subr.mxu0 0.0
        %687 = vmatpush1.msra.mxu0 0.0
        %688 = vmatprep.subr.mxu0 0.0
        %689 = vmatpush1.msra.mxu0 0.0
        %690 = vmatprep.subr.mxu0 0.0
        %691 = vmatpush1.msra.mxu0 0.0
        %692 = vmatprep.subr.mxu0 0.0
        %693 = vmatpush1.msra.mxu0 0.0
        %694 = vmatprep.subr.mxu0 0.0
        %695 = vmatpush1.msra.mxu0 0.0
        %696 = vmatprep.mubr.f32.mxu0 0.0
        %697 = vmatmul.mubr.f32.gmra.mrb[0].mxu0 %v613
        %v698 = vpop.f32.mrb[0].mxu0
        %v699 = vadd.f32 0.0, %v698
        %v700 = vpop.f32.mrb[0].mxu0
        %701 = vmatprep.mubr.f32.mxu0 0.0
        %702 = vmatmul.mubr.f32.gmra.mrb[0].mxu0 %v614
        %v703 = vpop.f32.mrb[0].mxu0
        %v704 = vadd.f32 0.0, %v703
        %v705 = vpop.f32.mrb[0].mxu0
        %706 = vmatprep.mubr.f32.mxu0 0.0
        %707 = vmatmul.mubr.f32.gmra.mrb[0].mxu0 %v615
        %v708 = vpop.f32.mrb[0].mxu0
        %v709 = vpop.f32.mrb[0].mxu0
        %710 = vdwg.mxu0
        %v711 = vadd.f32 %v699, 0.0
        %v712 = vadd.f32 %v704, 0.0
        %s713 = scalar_lea.vmem [#allocation5], 128
        %v714 = vld [vmem:[%s713] sm:$0xff]
        %v715 = vld [vmem:[%s713 + $0x8] sm:$0xff]
        %v716 = vld [vmem:[%s713 + $0x10] sm:$0xff]
        %v717 = vld [vmem:[%s713 + $0x18] sm:$0xff]
        %v718 = vld [vmem:[%s713 + $0x20] sm:$0xff]
        %v719 = vld [vmem:[%s713 + $0x28] sm:$0xff]
        %v720 = vld [vmem:[%s713 + $0x30] sm:$0xff]
        %v721 = vld [vmem:[%s713 + $0x38] sm:$0xff]
        %v722 = vld [vmem:[%s713 + $0x40] sm:$0xff]
        %v723 = vld [vmem:[%s713 + $0x48] sm:$0xff]
        %v724 = vld [vmem:[%s713 + $0x50] sm:$0xff]
        %v725 = vld [vmem:[%s713 + $0x58] sm:$0xff]
        %v726 = vld [vmem:[%s713 + $0x60] sm:$0xff]
        %v727 = vld [vmem:[%s713 + $0x68] sm:$0xff]
        %v728 = vld [vmem:[%s713 + $0x70] sm:$0xff]
        %v729 = vld [vmem:[%s713 + $0x78] sm:$0xff]
        %730 = vmatprep.subr.mxu0 0.0
        %731 = vmatpush1.msra.mxu0 %v714
        %732 = vmatprep.subr.mxu0 0.0
        %733 = vmatpush1.msra.mxu0 %v715
        %734 = vmatprep.subr.mxu0 0.0
        %735 = vmatpush1.msra.mxu0 %v716
        %736 = vmatprep.subr.mxu0 0.0
        %737 = vmatpush1.msra.mxu0 %v717
        %738 = vmatprep.subr.mxu0 0.0
        %739 = vmatpush1.msra.mxu0 %v718
        %740 = vmatprep.subr.mxu0 0.0
        %741 = vmatpush1.msra.mxu0 %v719
        %742 = vmatprep.subr.mxu0 0.0
        %743 = vmatpush1.msra.mxu0 %v720
        %744 = vmatprep.subr.mxu0 0.0
        %745 = vmatpush1.msra.mxu0 %v721
        %746 = vmatprep.subr.mxu0 0.0
        %747 = vmatpush1.msra.mxu0 %v722
        %748 = vmatprep.subr.mxu0 0.0
        %749 = vmatpush1.msra.mxu0 %v723
        %750 = vmatprep.subr.mxu0 0.0
        %751 = vmatpush1.msra.mxu0 %v724
        %752 = vmatprep.subr.mxu0 0.0
        %753 = vmatpush1.msra.mxu0 %v725
        %754 = vmatprep.subr.mxu0 0.0
        %755 = vmatpush1.msra.mxu0 %v726
        %756 = vmatprep.subr.mxu0 0.0
        %757 = vmatpush1.msra.mxu0 %v727
        %758 = vmatprep.subr.mxu0 0.0
        %759 = vmatpush1.msra.mxu0 %v728
        %760 = vmatprep.subr.mxu0 0.0
        %761 = vmatpush1.msra.mxu0 %v729
        %762 = vmatprep.subr.mxu0 0.0
        %763 = vmatpush1.msra.mxu0 0.0
        %764 = vmatprep.subr.mxu0 0.0
        %765 = vmatpush1.msra.mxu0 0.0
        %766 = vmatprep.subr.mxu0 0.0
        %767 = vmatpush1.msra.mxu0 0.0
        %768 = vmatprep.subr.mxu0 0.0
        %769 = vmatpush1.msra.mxu0 0.0
        %770 = vmatprep.subr.mxu0 0.0
        %771 = vmatpush1.msra.mxu0 0.0
        %772 = vmatprep.subr.mxu0 0.0
        %773 = vmatpush1.msra.mxu0 0.0
        %774 = vmatprep.subr.mxu0 0.0
        %775 = vmatpush1.msra.mxu0 0.0
        %776 = vmatprep.subr.mxu0 0.0
        %777 = vmatpush1.msra.mxu0 0.0
        %778 = vmatprep.subr.mxu0 0.0
        %779 = vmatpush1.msra.mxu0 0.0
        %780 = vmatprep.subr.mxu0 0.0
        %781 = vmatpush1.msra.mxu0 0.0
        %782 = vmatprep.subr.mxu0 0.0
        %783 = vmatpush1.msra.mxu0 0.0
        %784 = vmatprep.subr.mxu0 0.0
        %785 = vmatpush1.msra.mxu0 0.0
        %786 = vmatprep.subr.mxu0 0.0
        %787 = vmatpush1.msra.mxu0 0.0
        %788 = vmatprep.subr.mxu0 0.0
        %789 = vmatpush1.msra.mxu0 0.0
        %790 = vmatprep.subr.mxu0 0.0
        %791 = vmatpush1.msra.mxu0 0.0
        %792 = vmatprep.subr.mxu0 0.0
        %793 = vmatpush1.msra.mxu0 0.0
        %794 = vmatprep.mubr.f32.mxu0 0.0
        %795 = vmatmul.mubr.f32.gmra.mrb[0].mxu0 %v613
        %v796 = vpop.f32.mrb[0].mxu0
        %v797 = vadd.f32 0.0, %v796
        %v798 = vpop.f32.mrb[0].mxu0
        %799 = vmatprep.mubr.f32.mxu0 0.0
        %800 = vmatmul.mubr.f32.gmra.mrb[0].mxu0 %v614
        %v801 = vpop.f32.mrb[0].mxu0
        %v802 = vadd.f32 0.0, %v801
        %v803 = vpop.f32.mrb[0].mxu0
        %804 = vmatprep.mubr.f32.mxu0 0.0
        %805 = vmatmul.mubr.f32.gmra.mrb[0].mxu0 %v615
        %v806 = vpop.f32.mrb[0].mxu0
        %v807 = vadd.f32 0.0, %v806
        %v808 = vpop.f32.mrb[0].mxu0
        %809 = vdwg.mxu0
        %vm813 = vcmask 1046528
        %v814 = vrot.slane %v797, 1
        %v815 = vrot.slane %v802, 1
        %v816 = vsel %vm813, %v814, %v815
        %v817 = vrot.slane %v807, 1
        %v818 = vsel %vm813, %v815, %v817
        %v821 = vadd.f32 %v711, %v816
        %v822 = vadd.f32 %v712, %v818
        %s823 = scalar_lea.vmem [#allocation5], 256
        %v824 = vld [vmem:[%s823] sm:$0xff]
        %v825 = vld [vmem:[%s823 + $0x8] sm:$0xff]
        %v826 = vld [vmem:[%s823 + $0x10] sm:$0xff]
        %v827 = vld [vmem:[%s823 + $0x18] sm:$0xff]
        %v828 = vld [vmem:[%s823 + $0x20] sm:$0xff]
        %v829 = vld [vmem:[%s823 + $0x28] sm:$0xff]
        %v830 = vld [vmem:[%s823 + $0x30] sm:$0xff]
        %v831 = vld [vmem:[%s823 + $0x38] sm:$0xff]
        %v832 = vld [vmem:[%s823 + $0x40] sm:$0xff]
        %v833 = vld [vmem:[%s823 + $0x48] sm:$0xff]
        %v834 = vld [vmem:[%s823 + $0x50] sm:$0xff]
        %v835 = vld [vmem:[%s823 + $0x58] sm:$0xff]
        %v836 = vld [vmem:[%s823 + $0x60] sm:$0xff]
        %v837 = vld [vmem:[%s823 + $0x68] sm:$0xff]
        %v838 = vld [vmem:[%s823 + $0x70] sm:$0xff]
        %v839 = vld [vmem:[%s823 + $0x78] sm:$0xff]
        %840 = vmatprep.subr.mxu0 0.0
        %841 = vmatpush1.msra.mxu0 %v824
        %842 = vmatprep.subr.mxu0 0.0
        %843 = vmatpush1.msra.mxu0 %v825
        %844 = vmatprep.subr.mxu0 0.0
        %845 = vmatpush1.msra.mxu0 %v826
        %846 = vmatprep.subr.mxu0 0.0
        %847 = vmatpush1.msra.mxu0 %v827
        %848 = vmatprep.subr.mxu0 0.0
        %849 = vmatpush1.msra.mxu0 %v828
        %850 = vmatprep.subr.mxu0 0.0
        %851 = vmatpush1.msra.mxu0 %v829
        %852 = vmatprep.subr.mxu0 0.0
        %853 = vmatpush1.msra.mxu0 %v830
        %854 = vmatprep.subr.mxu0 0.0
        %855 = vmatpush1.msra.mxu0 %v831
        %856 = vmatprep.subr.mxu0 0.0
        %857 = vmatpush1.msra.mxu0 %v832
        %858 = vmatprep.subr.mxu0 0.0
        %859 = vmatpush1.msra.mxu0 %v833
        %860 = vmatprep.subr.mxu0 0.0
        %861 = vmatpush1.msra.mxu0 %v834
        %862 = vmatprep.subr.mxu0 0.0
        %863 = vmatpush1.msra.mxu0 %v835
        %864 = vmatprep.subr.mxu0 0.0
        %865 = vmatpush1.msra.mxu0 %v836
        %866 = vmatprep.subr.mxu0 0.0
        %867 = vmatpush1.msra.mxu0 %v837
        %868 = vmatprep.subr.mxu0 0.0
        %869 = vmatpush1.msra.mxu0 %v838
        %870 = vmatprep.subr.mxu0 0.0
        %871 = vmatpush1.msra.mxu0 %v839
        %872 = vmatprep.subr.mxu0 0.0
        %873 = vmatpush1.msra.mxu0 0.0
        %874 = vmatprep.subr.mxu0 0.0
        %875 = vmatpush1.msra.mxu0 0.0
        %876 = vmatprep.subr.mxu0 0.0
        %877 = vmatpush1.msra.mxu0 0.0
        %878 = vmatprep.subr.mxu0 0.0
        %879 = vmatpush1.msra.mxu0 0.0
        %880 = vmatprep.subr.mxu0 0.0
        %881 = vmatpush1.msra.mxu0 0.0
        %882 = vmatprep.subr.mxu0 0.0
        %883 = vmatpush1.msra.mxu0 0.0
        %884 = vmatprep.subr.mxu0 0.0
        %885 = vmatpush1.msra.mxu0 0.0
        %886 = vmatprep.subr.mxu0 0.0
        %887 = vmatpush1.msra.mxu0 0.0
        %888 = vmatprep.subr.mxu0 0.0
        %889 = vmatpush1.msra.mxu0 0.0
        %890 = vmatprep.subr.mxu0 0.0
        %891 = vmatpush1.msra.mxu0 0.0
        %892 = vmatprep.subr.mxu0 0.0
        %893 = vmatpush1.msra.mxu0 0.0
        %894 = vmatprep.subr.mxu0 0.0
        %895 = vmatpush1.msra.mxu0 0.0
        %896 = vmatprep.subr.mxu0 0.0
        %897 = vmatpush1.msra.mxu0 0.0
        %898 = vmatprep.subr.mxu0 0.0
        %899 = vmatpush1.msra.mxu0 0.0
        %900 = vmatprep.subr.mxu0 0.0
        %901 = vmatpush1.msra.mxu0 0.0
        %902 = vmatprep.subr.mxu0 0.0
        %903 = vmatpush1.msra.mxu0 0.0
        %904 = vmatprep.mubr.f32.mxu0 0.0
        %905 = vmatmul.mubr.f32.gmra.mrb[0].mxu0 %v613
        %v906 = vpop.f32.mrb[0].mxu0
        %v907 = vadd.f32 0.0, %v906
        %v908 = vpop.f32.mrb[0].mxu0
        %909 = vmatprep.mubr.f32.mxu0 0.0
        %910 = vmatmul.mubr.f32.gmra.mrb[0].mxu0 %v614
        %v911 = vpop.f32.mrb[0].mxu0
        %v912 = vadd.f32 0.0, %v911
        %v913 = vpop.f32.mrb[0].mxu0
        %914 = vmatprep.mubr.f32.mxu0 0.0
        %915 = vmatmul.mubr.f32.gmra.mrb[0].mxu0 %v615
        %v916 = vpop.f32.mrb[0].mxu0
        %v917 = vadd.f32 0.0, %v916
        %v918 = vpop.f32.mrb[0].mxu0
        %919 = vdwg.mxu0
        %vm923 = vcmask 1045504
        %v924 = vrot.slane %v907, 2
        %v925 = vrot.slane %v912, 2
        %v926 = vsel %vm923, %v924, %v925
        %v927 = vrot.slane %v917, 2
        %v928 = vsel %vm923, %v925, %v927
        %v931 = vadd.f32 %v821, %v926
        %v932 = vadd.f32 %v822, %v928
        %v933 = vld [vmem:[%s4] sm:$0x1]
        %v935 = vlaneseq
        %v936 = vshrl.u32 %v935, 7
        %v937 = vsub.s32 0, %v936
        %v938 = vrot.slane %v933, %v937
        %v940 = vadd.f32 %v931, %v938
        %v941 = vadd.f32 %v932, %v938
        %942 = vst [vmem:[%s261] sm:$0xff] %v940
        %943 = vst [vmem:[%s261 + $0x8] sm:$0xff] %v941
        %s944 = sand.u32 %s153, 1
        %s945 = scalar_lea.sflag [#allocation4], %s944
        %s946 = sand.u32 %s153, 1
        %s947 = smul.addr %s946, 16
        %s948 = scalar_lea.vmem [#allocation7], %s947
        // Predicated region
        $region49: #{tpu_custom_call.1} parent=39 // pred_check
          %p949 = pneg %p163
        $region50: #{tpu_custom_call.1} parent=39 // pred_check_branch
          %951 = sbr.rel (%p949) target = $region52
        $region51: #{tpu_custom_call.1} parent=39 // pred_region
          %s952 = smul.u32 2, %s26
          %s954 = ssub.s32 256, 256
          %955 = vsyncadd %s945, %s954
          %s956 = smul.addr %s25, 2
          %s957 = sadd.s32 %s952, %s956
          %s958 = smul.addr %s957, 128
          %s959 = scalar_lea.hbm %s5, %s958
          %s960 = sshll.u32 %s948, 4
          %s961 = int_to_ptr.vmem [resolvable:$true] %s960
          %966 = dma.vmem_to_hbm [thread:$0]  %s961, 256, %s959, %s945, 128, 128, 8
        $region52: #{tpu_custom_call.1} parent=39 // pred_fallthru
          _
      $region40: #{tpu_custom_call.1} parent=5 // pred_fallthru
        _
      %p967 = scmp.le.s32.totalorder 2, %s16
      // Predicated region
      $region53: #{tpu_custom_call.1} parent=5 // pred_check
        %p968 = pneg %p967
      $region54: #{tpu_custom_call.1} parent=5 // pred_check_branch
        %970 = sbr.rel (%p968) target = $region56
      $region55: #{tpu_custom_call.1} parent=5 // pred_region
        %s971 = ssub.s32 %s16, 2
        // Predicated region
        $region57: #{tpu_custom_call.1} parent=55 // pred_check
          %p972 = pneg %p169
        $region58: #{tpu_custom_call.1} parent=55 // pred_check_branch
          %974 = sbr.rel (%p972) target = $region60
        $region59: #{tpu_custom_call.1} parent=55 // pred_region
          %s975 = sand.u32 %s154, 1
          %s976 = scalar_lea.sflag [#allocation4], %s975
          %s977 = sand.u32 %s154, 1
          %s978 = smul.addr %s977, 16
          %s979 = scalar_lea.vmem [#allocation7], %s978
          %980 = dma.done %s976, 256
        $region60: #{tpu_custom_call.1} parent=55 // pred_fallthru
          _
      $region56: #{tpu_custom_call.1} parent=5 // pred_fallthru
        _
    $region6: #{tpu_custom_call.1} parent=1 // loop_footer
      %s20 = sadd.s32 1, %s16
    $region7: #{tpu_custom_call.1} parent=1 // loop_footer_branch
      %15 = sbr.rel target = $region3
    $region8: #{tpu_custom_call.1} parent=1 // loop_exit
      _
    %981 = vsyncpa [#allocation3], 1
    %s982 = scalar_lea.sflag [#allocation3], 1
    %983 = vsyncpa %s982, 1
    %984 = vsyncpa [#allocation6], 1
    %985 = vsyncpa [#allocation4], 1
    %s986 = scalar_lea.sflag [#allocation4], 1
    %987 = vsyncpa %s986, 1

// kernel: tpu_custom_call.1
$region0: #{tpu_custom_call.1}
  #allocation0 [shape = 'u32[]', space=smem, size = 0x4, offset = 0x4, fixed_abs, tag = 'smem constant byte address 0x4 - core index']
  #allocation1 [shape = 'u32[144,128]{1,0:T(1,128)}', space=vmem, size = 0x12000, scoped, tag = 'internal scratch']
  %s0 = inlined_call_operand.vmem [shape: f32[2,26,128], index: 0, kind: input, shape index: {}]
  %s1 = inlined_call_operand.hbm [shape: f32[3,128,128], index: 1, kind: input, shape index: {}]
  %s2 = inlined_call_operand.vmem [shape: f32[1,128], index: 2, kind: input, shape index: {}]
  %s3 = inlined_call_operand.hbm [shape: f32[3,128,128], index: 3, kind: input, shape index: {}]
  %s4 = inlined_call_operand.vmem [shape: f32[1,128], index: 4, kind: input, shape index: {}]
  %s5 = inlined_call_operand.hbm [shape: f32[2,16,128], index: 5, kind: output, shape index: {}]
  %s6 = sld [smem:[#allocation0]]
  $region61: #{tpu_custom_call.1} parent=0
    _
  %s8 = ssub.s32 1, %s6
  %s9 = scalar_select 0, %s8, %s6
  $region1: #{tpu_custom_call.1} parent=0
    #allocation2 [shape = 'u8[196608]{0}', space=vmem, size = 0x30000, scoped, tag = 'input window, operand 1, single buffered']
    #allocation3 [shape = 's32[2]{0}', space=sflag, size = 0x8, scoped, tag = 'scoped memory for tpu_custom_call.1']
    #allocation4 [shape = 's32[2]{0}', space=sflag, size = 0x8, scoped, tag = 'scoped memory for tpu_custom_call.1']
    #allocation5 [shape = 'u8[196608]{0}', space=vmem, size = 0x30000, scoped, tag = 'input window, operand 3, single buffered']
    #allocation6 [shape = 's32[1]{0}', space=sflag, size = 0x4, scoped, tag = 'scoped memory for tpu_custom_call.1']
    #allocation7 [shape = 'u8[16384]{0}', space=vmem, size = 0x4000, scoped, tag = 'output window, operand 0']
    %10 = vsyncpa [#allocation3], 0
    %11 = vsyncpa [#allocation6], 0
    %12 = vsyncpa [#allocation4], 0
    %s13 = scalar_lea.sflag [#allocation4], 1
    %14 = vsyncpa %s13, 0
    loop: start=0, step=1, limit=4
    $region2: #{tpu_custom_call.1} parent=1 // loop_pre_header
      _
    $region3: #{tpu_custom_call.1} parent=1 // loop_header
      %s16 = sphi 0, %s20
      %p17 = scmp.ge.s32.totalorder %s16, 4
      %s23 = sphi 0, %s35
      %s24 = sphi 0, %s31
      %s25 = sphi 0, %s23
      %s26 = sphi 0, %s24
      %s27 = sphi 0, %s25
      %s28 = sphi 0, %s26
      %s38 = sphi 0, %s40
      %s41 = sphi 0, %s38
      %s42 = sphi 0, %s41
      %s58 = sphi 0, %s42
      %s62 = sphi 0, %s62
      %s64 = sphi 0, %s62
      %s65 = sphi 0, %s64
      %s79 = sphi 0, %s65
      %s83 = sphi 0, %s83
      %s85 = sphi 0, %s83
      %s86 = sphi 0, %s85
      %s100 = sphi 0, %s86
      %s104 = sphi 0, %s104
      %s106 = sphi 0, %s104
      %s107 = sphi 0, %s106
      %s121 = sphi 0, %s107
      %s125 = sphi 0, %s125
      %s127 = sphi 0, %s125
      %s128 = sphi 0, %s127
      %s142 = sphi 0, %s128
      %s150 = sphi 0, %s152
      %s153 = sphi 0, %s150
      %s154 = sphi 0, %s153
      %s170 = sphi 0, %s154
    $region4: #{tpu_custom_call.1} parent=1 // loop_header_branch
      %19 = sbr.rel (%p17) target = $region8
    $region5: #{tpu_custom_call.1} parent=1 // loop_body
      %s21 = ssub.s32 %s16, 1
      %s22 = ssub.s32 %s16, 2
      %s29 = sadd.s32 1, %s24
      %p30 = scmp.ge.s32.totalorder %s29, 1
      %s31 = scalar_select %p30, 0, %s29
      %s32 = sadd.s32 1, %s23
      %s33 = scalar_select %p30, %s32, %s23
      %p34 = scmp.ge.s32.totalorder %s33, 2
      %s35 = scalar_select %p34, 0, %s33
      %s36 = ssub.s32 %s23, %s35
      %p37 = scmp.eq.s32.totalorder %s36, 0
      %s39 = sadd.s32 %s38, 1
      %s40 = scalar_select %p37, %s38, %s39
      %p43 = pneg %p37
      %p44 = scmp.eq.s32.totalorder %s16, 1
      %p45 = por %p43, %p44
      %p46 = scmp.ne.s32.totalorder %s38, %s41
      %p47 = scmp.eq.s32.totalorder %s16, 0
      %p48 = por %p46, %p47
      %p49 = scmp.ne.s32.totalorder %s38, %s41
      %p50 = scmp.eq.s32.totalorder %s21, 1
      %p51 = por %p49, %p50
      %p52 = scmp.ne.s32.totalorder %s41, %s42
      %p53 = scmp.eq.s32.totalorder %s21, 0
      %p54 = por %p52, %p53
      %p55 = scmp.ne.s32.totalorder %s41, %s42
      %p56 = scmp.eq.s32.totalorder %s22, 1
      %p57 = por %p55, %p56
      %p59 = scmp.ne.s32.totalorder %s42, %s58
      %p60 = scmp.eq.s32.totalorder %s22, 0
      %p61 = por %p59, %p60
      %s63 = sadd.s32 %s62, 1
      %p66 = scmp.eq.s32.totalorder %s16, 1
      %p67 = scmp.ne.s32.totalorder %s62, %s64
      %p68 = scmp.eq.s32.totalorder %s16, 0
      %p69 = por %p67, %p68
      %p70 = scmp.ne.s32.totalorder %s62, %s64
      %p71 = scmp.eq.s32.totalorder %s21, 1
      %p72 = por %p70, %p71
      %p73 = scmp.ne.s32.totalorder %s64, %s65
      %p74 = scmp.eq.s32.totalorder %s21, 0
      %p75 = por %p73, %p74
      %p76 = scmp.ne.s32.totalorder %s64, %s65
      %p77 = scmp.eq.s32.totalorder %s22, 1
      %p78 = por %p76, %p77
      %p80 = scmp.ne.s32.totalorder %s65, %s79
      %p81 = scmp.eq.s32.totalorder %s22, 0
      %p82 = por %p80, %p81
      %s84 = sadd.s32 %s83, 1
      %p87 = scmp.eq.s32.totalorder %s16, 1
      %p88 = scmp.ne.s32.totalorder %s83, %s85
      %p89 = scmp.eq.s32.totalorder %s16, 0
      %p90 = por %p88, %p89
      %p91 = scmp.ne.s32.totalorder %s83, %s85
      %p92 = scmp.eq.s32.totalorder %s21, 1
      %p93 = por %p91, %p92
      %p94 = scmp.ne.s32.totalorder %s85, %s86
      %p95 = scmp.eq.s32.totalorder %s21, 0
      %p96 = por %p94, %p95
      %p97 = scmp.ne.s32.totalorder %s85, %s86
      %p98 = scmp.eq.s32.totalorder %s22, 1
      %p99 = por %p97, %p98
      %p101 = scmp.ne.s32.totalorder %s86, %s100
      %p102 = scmp.eq.s32.totalorder %s22, 0
      %p103 = por %p101, %p102
      %s105 = sadd.s32 %s104, 1
      %p108 = scmp.eq.s32.totalorder %s16, 1
      %p109 = scmp.ne.s32.totalorder %s104, %s106
      %p110 = scmp.eq.s32.totalorder %s16, 0
      %p111 = por %p109, %p110
      %p112 = scmp.ne.s32.totalorder %s104, %s106
      %p113 = scmp.eq.s32.totalorder %s21, 1
      %p114 = por %p112, %p113
      %p115 = scmp.ne.s32.totalorder %s106, %s107
      %p116 = scmp.eq.s32.totalorder %s21, 0
      %p117 = por %p115, %p116
      %p118 = scmp.ne.s32.totalorder %s106, %s107
      %p119 = scmp.eq.s32.totalorder %s22, 1
      %p120 = por %p118, %p119
      %p122 = scmp.ne.s32.totalorder %s107, %s121
      %p123 = scmp.eq.s32.totalorder %s22, 0
      %p124 = por %p122, %p123
      %s126 = sadd.s32 %s125, 1
      %p129 = scmp.eq.s32.totalorder %s16, 1
      %p130 = scmp.ne.s32.totalorder %s125, %s127
      %p131 = scmp.eq.s32.totalorder %s16, 0
      %p132 = por %p130, %p131
      %p133 = scmp.ne.s32.totalorder %s125, %s127
      %p134 = scmp.eq.s32.totalorder %s21, 1
      %p135 = por %p133, %p134
      %p136 = scmp.ne.s32.totalorder %s127, %s128
      %p137 = scmp.eq.s32.totalorder %s21, 0
      %p138 = por %p136, %p137
      %p139 = scmp.ne.s32.totalorder %s127, %s128
      %p140 = scmp.eq.s32.totalorder %s22, 1
      %p141 = por %p139, %p140
      %p143 = scmp.ne.s32.totalorder %s128, %s142
      %p144 = scmp.eq.s32.totalorder %s22, 0
      %p145 = por %p143, %p144
      %s146 = ssub.s32 %s23, %s35
      %s147 = ssub.s32 %s24, %s31
      %s148 = sor.u32 %s146, %s147
      %p149 = scmp.eq.s32.totalorder %s148, 0
      %s151 = sadd.s32 %s150, 1
      %s152 = scalar_select %p149, %s150, %s151
      %p155 = pneg %p149
      %p156 = scmp.eq.s32.totalorder %s16, 1
      %p157 = por %p155, %p156
      %p158 = scmp.ne.s32.totalorder %s150, %s153
      %p159 = scmp.eq.s32.totalorder %s16, 0
      %p160 = por %p158, %p159
      %p161 = scmp.ne.s32.totalorder %s150, %s153
      %p162 = scmp.eq.s32.totalorder %s21, 1
      %p163 = por %p161, %p162
      %p164 = scmp.ne.s32.totalorder %s153, %s154
      %p165 = scmp.eq.s32.totalorder %s21, 0
      %p166 = por %p164, %p165
      %p167 = scmp.ne.s32.totalorder %s153, %s154
      %p168 = scmp.eq.s32.totalorder %s22, 1
      %p169 = por %p167, %p168
      %p171 = scmp.ne.s32.totalorder %s154, %s170
      %p172 = scmp.eq.s32.totalorder %s22, 0
      %p173 = por %p171, %p172
      %p174 = scmp.le.s32.totalorder 1, %s16
      %p175 = scmp.lt.s32.totalorder %s16, 3
      %p176 = pnand %p174, %p175
      %p177 = pneg %p176
      // Predicated region
      $region9: #{tpu_custom_call.1} parent=5 // pred_check
        _
      $region10: #{tpu_custom_call.1} parent=5 // pred_check_branch
        %179 = sbr.rel (%p176) target = $region12
      $region11: #{tpu_custom_call.1} parent=5 // pred_region
        %s180 = ssub.s32 %s16, 1
        // Predicated region
        $region13: #{tpu_custom_call.1} parent=11 // pred_check
          %p181 = pneg %p75
        $region14: #{tpu_custom_call.1} parent=11 // pred_check_branch
          %183 = sbr.rel (%p181) target = $region16
        $region15: #{tpu_custom_call.1} parent=11 // pred_region
          %s185 = ssub.s32 6144, 6144
          %186 = vsyncadd [#allocation3], %s185
          %s187 = sshll.u32 [#allocation2], 4
          %s188 = int_to_ptr.vmem [resolvable:$true] %s187
          %193 = dma.hbm_to_vmem [thread:$0]  %s1, 6144, %s188, [#allocation3], 128, 128, 8
        $region16: #{tpu_custom_call.1} parent=11 // pred_fallthru
          _
        // Predicated region
        $region17: #{tpu_custom_call.1} parent=11 // pred_check
          %p194 = pneg %p96
        $region18: #{tpu_custom_call.1} parent=11 // pred_check_branch
          %196 = sbr.rel (%p194) target = $region20
        $region19: #{tpu_custom_call.1} parent=11 // pred_region
          _
        $region20: #{tpu_custom_call.1} parent=11 // pred_fallthru
          _
        // Predicated region
        $region21: #{tpu_custom_call.1} parent=11 // pred_check
          %p197 = pneg %p117
        $region22: #{tpu_custom_call.1} parent=11 // pred_check_branch
          %199 = sbr.rel (%p197) target = $region24
        $region23: #{tpu_custom_call.1} parent=11 // pred_region
          %s201 = ssub.s32 6144, 6144
          %202 = vsyncadd [#allocation6], %s201
          %s203 = sshll.u32 [#allocation5], 4
          %s204 = int_to_ptr.vmem [resolvable:$true] %s203
          %209 = dma.hbm_to_vmem [thread:$0]  %s3, 6144, %s204, [#allocation6], 128, 128, 8
        $region24: #{tpu_custom_call.1} parent=11 // pred_fallthru
          _
        // Predicated region
        $region25: #{tpu_custom_call.1} parent=11 // pred_check
          %p210 = pneg %p138
        $region26: #{tpu_custom_call.1} parent=11 // pred_check_branch
          %212 = sbr.rel (%p210) target = $region28
        $region27: #{tpu_custom_call.1} parent=11 // pred_region
          _
        $region28: #{tpu_custom_call.1} parent=11 // pred_fallthru
          _
      $region12: #{tpu_custom_call.1} parent=5 // pred_fallthru
        _
      %p213 = scmp.lt.s32.totalorder %s16, 2
      // Predicated region
      $region29: #{tpu_custom_call.1} parent=5 // pred_check
        %p214 = pneg %p213
      $region30: #{tpu_custom_call.1} parent=5 // pred_check_branch
        %216 = sbr.rel (%p214) target = $region32
      $region31: #{tpu_custom_call.1} parent=5 // pred_region
        // Predicated region
        $region33: #{tpu_custom_call.1} parent=31 // pred_check
          %p217 = pneg %p48
        $region34: #{tpu_custom_call.1} parent=31 // pred_check_branch
          %219 = sbr.rel (%p217) target = $region36
        $region35: #{tpu_custom_call.1} parent=31 // pred_region
          %p220 = scmp.lt.s32.totalorder %s23, 1
          %s221 = scalar_select %p220, %s23, 1
          %s222 = smul.addr %s221, 4
          %s223 = smul.addr %s222, 8
          %s224 = scalar_lea.vmem %s0, %s223
        $region36: #{tpu_custom_call.1} parent=31 // pred_fallthru
          _
      $region32: #{tpu_custom_call.1} parent=5 // pred_fallthru
        _
      %p225 = scmp.le.s32.totalorder 1, %s16
      %p226 = scmp.lt.s32.totalorder %s16, 3
      %p227 = pnand %p225, %p226
      %p228 = pneg %p227
      // Predicated region
      $region37: #{tpu_custom_call.1} parent=5 // pred_check
        _
      $region38: #{tpu_custom_call.1} parent=5 // pred_check_branch
        %230 = sbr.rel (%p227) target = $region40
      $region39: #{tpu_custom_call.1} parent=5 // pred_region
        %s231 = ssub.s32 %s16, 1
        // Predicated region
        $region41: #{tpu_custom_call.1} parent=39 // pred_check
          %p232 = pneg %p75
        $region42: #{tpu_custom_call.1} parent=39 // pred_check_branch
          %234 = sbr.rel (%p232) target = $region44
        $region43: #{tpu_custom_call.1} parent=39 // pred_region
          %235 = dma.done [#allocation3], 6144
        $region44: #{tpu_custom_call.1} parent=39 // pred_fallthru
          _
        // Predicated region
        $region45: #{tpu_custom_call.1} parent=39 // pred_check
          %p236 = pneg %p117
        $region46: #{tpu_custom_call.1} parent=39 // pred_check_branch
          %238 = sbr.rel (%p236) target = $region48
        $region47: #{tpu_custom_call.1} parent=39 // pred_region
          %239 = dma.done [#allocation6], 6144
        $region48: #{tpu_custom_call.1} parent=39 // pred_fallthru
          _
        %p240 = scmp.lt.s32.totalorder %s25, 1
        %s241 = scalar_select %p240, %s25, 1
        %s242 = smul.addr %s241, 4
        %s243 = smul.addr %s242, 8
        %s244 = scalar_lea.vmem %s0, %s243
        %p245 = pneg %p54
        %p246 = pneg %p51
        %p247 = pneg %p75
        %p248 = pneg %p72
        %p249 = pneg %p96
        %p250 = pneg %p93
        %p251 = pneg %p117
        %p252 = pneg %p114
        %p253 = pneg %p138
        %p254 = pneg %p135
        %p255 = pneg %p166
        %p256 = pneg %p163
        %s257 = sand.u32 %s153, 1
        %s258 = scalar_lea.sflag [#allocation4], %s257
        %s259 = sand.u32 %s153, 1
        %s260 = smul.addr %s259, 16
        %s261 = scalar_lea.vmem [#allocation7], %s260
        %p262 = scmp.lt.s32.totalorder %s25, 1
        %s263 = scalar_select %p262, %s25, 1
        %s264 = smul.addr %s263, 4
        %s265 = smul.addr %s264, 8
        %s266 = scalar_lea.vmem %s0, %s265
        %s267 = smul.u32 2, %s26
        %s268 = smul.u32 %s26, 16
        %s269 = scalar_lea.vmem %s266, %s268
        %v270 = vld [vmem:[%s269] sm:$0xff]
        %v271 = vld [vmem:[%s269 + $0x8] sm:$0xff]
        %v272 = vld [vmem:[%s269 + $0x10] sm:$0xff]
        %s273 = sadd.s32 %s268, 1
        %s274 = scalar_lea.vmem %s266, %s273
        %v275 = vld [vmem:[%s274] sm:$0xff]
        %v276 = vld [vmem:[%s274 + $0x8] sm:$0xff]
        %v277 = vld [vmem:[%s274 + $0x10] sm:$0xff]
        %s278 = sadd.s32 %s268, 2
        %s279 = scalar_lea.vmem %s266, %s278
        %v280 = vld [vmem:[%s279] sm:$0xff]
        %v281 = vld [vmem:[%s279 + $0x8] sm:$0xff]
        %v282 = vld [vmem:[%s279 + $0x10] sm:$0xff]
        %v283 = vlaneseq
        %v284 = vshrl.u32 %v283, 7
        %v285 = vadd.s32 %v284, 8
        %v286 = vadd.s32 %v284, 16
        %s287 = ssub.s32 %s268, 1
        %v288 = vstv %s287
        %v289 = vadd.s32 %v288, %v284
        %v290 = vadd.s32 %v288, %v285
        %v291 = vadd.s32 %v288, %v286
        %vm292 = vcmp.ge.s32.totalorder %v289, 0
        %vm293 = vcmp.ge.s32.totalorder %v290, 0
        %vm294 = vcmp.ge.s32.totalorder %v291, 0
        %vm295 = vcmp.lt.s32.totalorder %v289, 16
        %vm296 = vcmp.lt.s32.totalorder %v290, 16
        %vm297 = vcmp.lt.s32.totalorder %v291, 16
        %vm298 = vmand %vm292, %vm295
        %vm299 = vmand %vm293, %vm296
        %vm300 = vmand %vm294, %vm297
        %v301 = vld [vmem:[#allocation2] sm:$0xff]
        %v302 = vld [vmem:[#allocation2 + $0x8] sm:$0xff]
        %v303 = vld [vmem:[#allocation2 + $0x10] sm:$0xff]
        %v304 = vld [vmem:[#allocation2 + $0x18] sm:$0xff]
        %v305 = vld [vmem:[#allocation2 + $0x20] sm:$0xff]
        %v306 = vld [vmem:[#allocation2 + $0x28] sm:$0xff]
        %v307 = vld [vmem:[#allocation2 + $0x30] sm:$0xff]
        %v308 = vld [vmem:[#allocation2 + $0x38] sm:$0xff]
        %v309 = vld [vmem:[#allocation2 + $0x40] sm:$0xff]
        %v310 = vld [vmem:[#allocation2 + $0x48] sm:$0xff]
        %v311 = vld [vmem:[#allocation2 + $0x50] sm:$0xff]
        %v312 = vld [vmem:[#allocation2 + $0x58] sm:$0xff]
        %v313 = vld [vmem:[#allocation2 + $0x60] sm:$0xff]
        %v314 = vld [vmem:[#allocation2 + $0x68] sm:$0xff]
        %v315 = vld [vmem:[#allocation2 + $0x70] sm:$0xff]
        %v316 = vld [vmem:[#allocation2 + $0x78] sm:$0xff]
        %s317 = scalar_lea.vmem [#allocation2], 128
        %v318 = vld [vmem:[%s317] sm:$0xff]
        %v319 = vld [vmem:[%s317 + $0x8] sm:$0xff]
        %v320 = vld [vmem:[%s317 + $0x10] sm:$0xff]
        %v321 = vld [vmem:[%s317 + $0x18] sm:$0xff]
        %v322 = vld [vmem:[%s317 + $0x20] sm:$0xff]
        %v323 = vld [vmem:[%s317 + $0x28] sm:$0xff]
        %v324 = vld [vmem:[%s317 + $0x30] sm:$0xff]
        %v325 = vld [vmem:[%s317 + $0x38] sm:$0xff]
        %v326 = vld [vmem:[%s317 + $0x40] sm:$0xff]
        %v327 = vld [vmem:[%s317 + $0x48] sm:$0xff]
        %v328 = vld [vmem:[%s317 + $0x50] sm:$0xff]
        %v329 = vld [vmem:[%s317 + $0x58] sm:$0xff]
        %v330 = vld [vmem:[%s317 + $0x60] sm:$0xff]
        %v331 = vld [vmem:[%s317 + $0x68] sm:$0xff]
        %v332 = vld [vmem:[%s317 + $0x70] sm:$0xff]
        %v333 = vld [vmem:[%s317 + $0x78] sm:$0xff]
        %334 = vmatprep.subr.mxu0 0.0
        %335 = vmatpush1.msra.mxu0 %v318
        %336 = vmatprep.subr.mxu0 0.0
        %337 = vmatpush1.msra.mxu0 %v319
        %338 = vmatprep.subr.mxu0 0.0
        %339 = vmatpush1.msra.mxu0 %v320
        %340 = vmatprep.subr.mxu0 0.0
        %341 = vmatpush1.msra.mxu0 %v321
        %342 = vmatprep.subr.mxu0 0.0
        %343 = vmatpush1.msra.mxu0 %v322
        %344 = vmatprep.subr.mxu0 0.0
        %345 = vmatpush1.msra.mxu0 %v323
        %346 = vmatprep.subr.mxu0 0.0
        %347 = vmatpush1.msra.mxu0 %v324
        %348 = vmatprep.subr.mxu0 0.0
        %349 = vmatpush1.msra.mxu0 %v325
        %350 = vmatprep.subr.mxu0 0.0
        %351 = vmatpush1.msra.mxu0 %v326
        %352 = vmatprep.subr.mxu0 0.0
        %353 = vmatpush1.msra.mxu0 %v327
        %354 = vmatprep.subr.mxu0 0.0
        %355 = vmatpush1.msra.mxu0 %v328
        %356 = vmatprep.subr.mxu0 0.0
        %357 = vmatpush1.msra.mxu0 %v329
        %358 = vmatprep.subr.mxu0 0.0
        %359 = vmatpush1.msra.mxu0 %v330
        %360 = vmatprep.subr.mxu0 0.0
        %361 = vmatpush1.msra.mxu0 %v331
        %362 = vmatprep.subr.mxu0 0.0
        %363 = vmatpush1.msra.mxu0 %v332
        %364 = vmatprep.subr.mxu0 0.0
        %365 = vmatpush1.msra.mxu0 %v333
        %366 = vmatprep.subr.mxu0 0.0
        %367 = vmatpush1.msra.mxu0 0.0
        %368 = vmatprep.subr.mxu0 0.0
        %369 = vmatpush1.msra.mxu0 0.0
        %370 = vmatprep.subr.mxu0 0.0
        %371 = vmatpush1.msra.mxu0 0.0
        %372 = vmatprep.subr.mxu0 0.0
        %373 = vmatpush1.msra.mxu0 0.0
        %374 = vmatprep.subr.mxu0 0.0
        %375 = vmatpush1.msra.mxu0 0.0
        %376 = vmatprep.subr.mxu0 0.0
        %377 = vmatpush1.msra.mxu0 0.0
        %378 = vmatprep.subr.mxu0 0.0
        %379 = vmatpush1.msra.mxu0 0.0
        %380 = vmatprep.subr.mxu0 0.0
        %381 = vmatpush1.msra.mxu0 0.0
        %382 = vmatprep.subr.mxu0 0.0
        %383 = vmatpush1.msra.mxu0 0.0
        %384 = vmatprep.subr.mxu0 0.0
        %385 = vmatpush1.msra.mxu0 0.0
        %386 = vmatprep.subr.mxu0 0.0
        %387 = vmatpush1.msra.mxu0 0.0
        %388 = vmatprep.subr.mxu0 0.0
        %389 = vmatpush1.msra.mxu0 0.0
        %390 = vmatprep.subr.mxu0 0.0
        %391 = vmatpush1.msra.mxu0 0.0
        %392 = vmatprep.subr.mxu0 0.0
        %393 = vmatpush1.msra.mxu0 0.0
        %394 = vmatprep.subr.mxu0 0.0
        %395 = vmatpush1.msra.mxu0 0.0
        %396 = vmatprep.subr.mxu0 0.0
        %397 = vmatpush1.msra.mxu0 0.0
        %398 = vmatprep.mubr.f32.mxu0 0.0
        %399 = vmatmul.mubr.f32.gmra.mrb[0].mxu0 %v275
        %v400 = vpop.f32.mrb[0].mxu0
        %v401 = vadd.f32 0.0, %v400
        %v402 = vpop.f32.mrb[0].mxu0
        %403 = vmatprep.mubr.f32.mxu0 0.0
        %404 = vmatmul.mubr.f32.gmra.mrb[0].mxu0 %v276
        %v405 = vpop.f32.mrb[0].mxu0
        %v406 = vadd.f32 0.0, %v405
        %v407 = vpop.f32.mrb[0].mxu0
        %408 = vmatprep.mubr.f32.mxu0 0.0
        %409 = vmatmul.mubr.f32.gmra.mrb[0].mxu0 %v277
        %v410 = vpop.f32.mrb[0].mxu0
        %v411 = vadd.f32 0.0, %v410
        %v412 = vpop.f32.mrb[0].mxu0
        %413 = vdwg.mxu0
        %414 = vmatprep.subr.mxu0 0.0
        %415 = vmatpush1.msra.mxu0 %v301
        %416 = vmatprep.subr.mxu0 0.0
        %417 = vmatpush1.msra.mxu0 %v302
        %418 = vmatprep.subr.mxu0 0.0
        %419 = vmatpush1.msra.mxu0 %v303
        %420 = vmatprep.subr.mxu0 0.0
        %421 = vmatpush1.msra.mxu0 %v304
        %422 = vmatprep.subr.mxu0 0.0
        %423 = vmatpush1.msra.mxu0 %v305
        %424 = vmatprep.subr.mxu0 0.0
        %425 = vmatpush1.msra.mxu0 %v306
        %426 = vmatprep.subr.mxu0 0.0
        %427 = vmatpush1.msra.mxu0 %v307
        %428 = vmatprep.subr.mxu0 0.0
        %429 = vmatpush1.msra.mxu0 %v308
        %430 = vmatprep.subr.mxu0 0.0
        %431 = vmatpush1.msra.mxu0 %v309
        %432 = vmatprep.subr.mxu0 0.0
        %433 = vmatpush1.msra.mxu0 %v310
        %434 = vmatprep.subr.mxu0 0.0
        %435 = vmatpush1.msra.mxu0 %v311
        %436 = vmatprep.subr.mxu0 0.0
        %437 = vmatpush1.msra.mxu0 %v312
        %438 = vmatprep.subr.mxu0 0.0
        %439 = vmatpush1.msra.mxu0 %v313
        %440 = vmatprep.subr.mxu0 0.0
        %441 = vmatpush1.msra.mxu0 %v314
        %442 = vmatprep.subr.mxu0 0.0
        %443 = vmatpush1.msra.mxu0 %v315
        %444 = vmatprep.subr.mxu0 0.0
        %445 = vmatpush1.msra.mxu0 %v316
        %446 = vmatprep.subr.mxu0 0.0
        %447 = vmatpush1.msra.mxu0 0.0
        %448 = vmatprep.subr.mxu0 0.0
        %449 = vmatpush1.msra.mxu0 0.0
        %450 = vmatprep.subr.mxu0 0.0
        %451 = vmatpush1.msra.mxu0 0.0
        %452 = vmatprep.subr.mxu0 0.0
        %453 = vmatpush1.msra.mxu0 0.0
        %454 = vmatprep.subr.mxu0 0.0
        %455 = vmatpush1.msra.mxu0 0.0
        %456 = vmatprep.subr.mxu0 0.0
        %457 = vmatpush1.msra.mxu0 0.0
        %458 = vmatprep.subr.mxu0 0.0
        %459 = vmatpush1.msra.mxu0 0.0
        %460 = vmatprep.subr.mxu0 0.0
        %461 = vmatpush1.msra.mxu0 0.0
        %462 = vmatprep.subr.mxu0 0.0
        %463 = vmatpush1.msra.mxu0 0.0
        %464 = vmatprep.subr.mxu0 0.0
        %465 = vmatpush1.msra.mxu0 0.0
        %466 = vmatprep.subr.mxu0 0.0
        %467 = vmatpush1.msra.mxu0 0.0
        %468 = vmatprep.subr.mxu0 0.0
        %469 = vmatpush1.msra.mxu0 0.0
        %470 = vmatprep.subr.mxu0 0.0
        %471 = vmatpush1.msra.mxu0 0.0
        %472 = vmatprep.subr.mxu0 0.0
        %473 = vmatpush1.msra.mxu0 0.0
        %474 = vmatprep.subr.mxu0 0.0
        %475 = vmatpush1.msra.mxu0 0.0
        %476 = vmatprep.subr.mxu0 0.0
        %477 = vmatpush1.msra.mxu0 0.0
        %478 = vmatprep.mubr.f32.mxu0 0.0
        %479 = vmatmul.mubr.f32.gmra.mrb[0].mxu0 %v270
        %v480 = vpop.f32.mrb[0].mxu0
        %v481 = vadd.f32 %v401, %v480
        %v482 = vpop.f32.mrb[0].mxu0
        %483 = vmatprep.mubr.f32.mxu0 0.0
        %484 = vmatmul.mubr.f32.gmra.mrb[0].mxu0 %v271
        %v485 = vpop.f32.mrb[0].mxu0
        %v486 = vadd.f32 %v406, %v485
        %v487 = vpop.f32.mrb[0].mxu0
        %488 = vmatprep.mubr.f32.mxu0 0.0
        %489 = vmatmul.mubr.f32.gmra.mrb[0].mxu0 %v272
        %v490 = vpop.f32.mrb[0].mxu0
        %v491 = vadd.f32 %v411, %v490
        %v492 = vpop.f32.mrb[0].mxu0
        %493 = vdwg.mxu0
        %s494 = scalar_lea.vmem [#allocation2], 256
        %v495 = vld [vmem:[%s494] sm:$0xff]
        %v496 = vld [vmem:[%s494 + $0x8] sm:$0xff]
        %v497 = vld [vmem:[%s494 + $0x10] sm:$0xff]
        %v498 = vld [vmem:[%s494 + $0x18] sm:$0xff]
        %v499 = vld [vmem:[%s494 + $0x20] sm:$0xff]
        %v500 = vld [vmem:[%s494 + $0x28] sm:$0xff]
        %v501 = vld [vmem:[%s494 + $0x30] sm:$0xff]
        %v502 = vld [vmem:[%s494 + $0x38] sm:$0xff]
        %v503 = vld [vmem:[%s494 + $0x40] sm:$0xff]
        %v504 = vld [vmem:[%s494 + $0x48] sm:$0xff]
        %v505 = vld [vmem:[%s494 + $0x50] sm:$0xff]
        %v506 = vld [vmem:[%s494 + $0x58] sm:$0xff]
        %v507 = vld [vmem:[%s494 + $0x60] sm:$0xff]
        %v508 = vld [vmem:[%s494 + $0x68] sm:$0xff]
        %v509 = vld [vmem:[%s494 + $0x70] sm:$0xff]
        %v510 = vld [vmem:[%s494 + $0x78] sm:$0xff]
        %511 = vmatprep.subr.mxu0 0.0
        %512 = vmatpush1.msra.mxu0 %v495
        %513 = vmatprep.subr.mxu0 0.0
        %514 = vmatpush1.msra.mxu0 %v496
        %515 = vmatprep.subr.mxu0 0.0
        %516 = vmatpush1.msra.mxu0 %v497
        %517 = vmatprep.subr.mxu0 0.0
        %518 = vmatpush1.msra.mxu0 %v498
        %519 = vmatprep.subr.mxu0 0.0
        %520 = vmatpush1.msra.mxu0 %v499
        %521 = vmatprep.subr.mxu0 0.0
        %522 = vmatpush1.msra.mxu0 %v500
        %523 = vmatprep.subr.mxu0 0.0
        %524 = vmatpush1.msra.mxu0 %v501
        %525 = vmatprep.subr.mxu0 0.0
        %526 = vmatpush1.msra.mxu0 %v502
        %527 = vmatprep.subr.mxu0 0.0
        %528 = vmatpush1.msra.mxu0 %v503
        %529 = vmatprep.subr.mxu0 0.0
        %530 = vmatpush1.msra.mxu0 %v504
        %531 = vmatprep.subr.mxu0 0.0
        %532 = vmatpush1.msra.mxu0 %v505
        %533 = vmatprep.subr.mxu0 0.0
        %534 = vmatpush1.msra.mxu0 %v506
        %535 = vmatprep.subr.mxu0 0.0
        %536 = vmatpush1.msra.mxu0 %v507
        %537 = vmatprep.subr.mxu0 0.0
        %538 = vmatpush1.msra.mxu0 %v508
        %539 = vmatprep.subr.mxu0 0.0
        %540 = vmatpush1.msra.mxu0 %v509
        %541 = vmatprep.subr.mxu0 0.0
        %542 = vmatpush1.msra.mxu0 %v510
        %543 = vmatprep.subr.mxu0 0.0
        %544 = vmatpush1.msra.mxu0 0.0
        %545 = vmatprep.subr.mxu0 0.0
        %546 = vmatpush1.msra.mxu0 0.0
        %547 = vmatprep.subr.mxu0 0.0
        %548 = vmatpush1.msra.mxu0 0.0
        %549 = vmatprep.subr.mxu0 0.0
        %550 = vmatpush1.msra.mxu0 0.0
        %551 = vmatprep.subr.mxu0 0.0
        %552 = vmatpush1.msra.mxu0 0.0
        %553 = vmatprep.subr.mxu0 0.0
        %554 = vmatpush1.msra.mxu0 0.0
        %555 = vmatprep.subr.mxu0 0.0
        %556 = vmatpush1.msra.mxu0 0.0
        %557 = vmatprep.subr.mxu0 0.0
        %558 = vmatpush1.msra.mxu0 0.0
        %559 = vmatprep.subr.mxu0 0.0
        %560 = vmatpush1.msra.mxu0 0.0
        %561 = vmatprep.subr.mxu0 0.0
        %562 = vmatpush1.msra.mxu0 0.0
        %563 = vmatprep.subr.mxu0 0.0
        %564 = vmatpush1.msra.mxu0 0.0
        %565 = vmatprep.subr.mxu0 0.0
        %566 = vmatpush1.msra.mxu0 0.0
        %567 = vmatprep.subr.mxu0 0.0
        %568 = vmatpush1.msra.mxu0 0.0
        %569 = vmatprep.subr.mxu0 0.0
        %570 = vmatpush1.msra.mxu0 0.0
        %571 = vmatprep.subr.mxu0 0.0
        %572 = vmatpush1.msra.mxu0 0.0
        %573 = vmatprep.subr.mxu0 0.0
        %574 = vmatpush1.msra.mxu0 0.0
        %575 = vmatprep.mubr.f32.mxu0 0.0
        %576 = vmatmul.mubr.f32.gmra.mrb[0].mxu0 %v280
        %v577 = vpop.f32.mrb[0].mxu0
        %v578 = vadd.f32 0.0, %v577
        %v579 = vpop.f32.mrb[0].mxu0
        %580 = vmatprep.mubr.f32.mxu0 0.0
        %581 = vmatmul.mubr.f32.gmra.mrb[0].mxu0 %v281
        %v582 = vpop.f32.mrb[0].mxu0
        %v583 = vadd.f32 0.0, %v582
        %v584 = vpop.f32.mrb[0].mxu0
        %585 = vmatprep.mubr.f32.mxu0 0.0
        %586 = vmatmul.mubr.f32.gmra.mrb[0].mxu0 %v282
        %v587 = vpop.f32.mrb[0].mxu0
        %v588 = vadd.f32 0.0, %v587
        %v589 = vpop.f32.mrb[0].mxu0
        %590 = vdwg.mxu0
        %v591 = vadd.f32 %v481, %v578
        %v592 = vadd.f32 %v486, %v583
        %v593 = vadd.f32 %v491, %v588
        %v594 = vld [vmem:[%s2] sm:$0x1]
        %v596 = vlaneseq
        %v597 = vshrl.u32 %v596, 7
        %v598 = vsub.s32 0, %v597
        %v599 = vrot.slane %v594, %v598
        %v601 = vadd.f32 %v591, %v599
        %v602 = vadd.f32 %v592, %v599
        %v603 = vadd.f32 %v593, %v599
        %v604 = vmax.f32 %v601, 0.0
        %v605 = vmax.f32 %v602, 0.0
        %v606 = vmax.f32 %v603, 0.0
        %v607 = vsel %vm298, 1, 0
        %v608 = vsel %vm299, 1, 0
        %v609 = vsel %vm300, 1, 0
        %vm610 = vcmp.eq.s32.totalorder %v607, 1
        %vm611 = vcmp.eq.s32.totalorder %v608, 1
        %vm612 = vcmp.eq.s32.totalorder %v609, 1
        %v613 = vsel %vm610, %v604, 0.0
        %v614 = vsel %vm611, %v605, 0.0
        %v615 = vsel %vm612, %v606, 0.0
        %v616 = vld [vmem:[#allocation5] sm:$0xff]
        %v617 = vld [vmem:[#allocation5 + $0x8] sm:$0xff]
        %v618 = vld [vmem:[#allocation5 + $0x10] sm:$0xff]
        %v619 = vld [vmem:[#allocation5 + $0x18] sm:$0xff]
        %v620 = vld [vmem:[#allocation5 + $0x20] sm:$0xff]
        %v621 = vld [vmem:[#allocation5 + $0x28] sm:$0xff]
        %v622 = vld [vmem:[#allocation5 + $0x30] sm:$0xff]
        %v623 = vld [vmem:[#allocation5 + $0x38] sm:$0xff]
        %v624 = vld [vmem:[#allocation5 + $0x40] sm:$0xff]
        %v625 = vld [vmem:[#allocation5 + $0x48] sm:$0xff]
        %v626 = vld [vmem:[#allocation5 + $0x50] sm:$0xff]
        %v627 = vld [vmem:[#allocation5 + $0x58] sm:$0xff]
        %v628 = vld [vmem:[#allocation5 + $0x60] sm:$0xff]
        %v629 = vld [vmem:[#allocation5 + $0x68] sm:$0xff]
        %v630 = vld [vmem:[#allocation5 + $0x70] sm:$0xff]
        %v631 = vld [vmem:[#allocation5 + $0x78] sm:$0xff]
        %632 = vmatprep.subr.mxu0 0.0
        %633 = vmatpush1.msra.mxu0 %v616
        %634 = vmatprep.subr.mxu0 0.0
        %635 = vmatpush1.msra.mxu0 %v617
        %636 = vmatprep.subr.mxu0 0.0
        %637 = vmatpush1.msra.mxu0 %v618
        %638 = vmatprep.subr.mxu0 0.0
        %639 = vmatpush1.msra.mxu0 %v619
        %640 = vmatprep.subr.mxu0 0.0
        %641 = vmatpush1.msra.mxu0 %v620
        %642 = vmatprep.subr.mxu0 0.0
        %643 = vmatpush1.msra.mxu0 %v621
        %644 = vmatprep.subr.mxu0 0.0
        %645 = vmatpush1.msra.mxu0 %v622
        %646 = vmatprep.subr.mxu0 0.0
        %647 = vmatpush1.msra.mxu0 %v623
        %648 = vmatprep.subr.mxu0 0.0
        %649 = vmatpush1.msra.mxu0 %v624
        %650 = vmatprep.subr.mxu0 0.0
        %651 = vmatpush1.msra.mxu0 %v625
        %652 = vmatprep.subr.mxu0 0.0
        %653 = vmatpush1.msra.mxu0 %v626
        %654 = vmatprep.subr.mxu0 0.0
        %655 = vmatpush1.msra.mxu0 %v627
        %656 = vmatprep.subr.mxu0 0.0
        %657 = vmatpush1.msra.mxu0 %v628
        %658 = vmatprep.subr.mxu0 0.0
        %659 = vmatpush1.msra.mxu0 %v629
        %660 = vmatprep.subr.mxu0 0.0
        %661 = vmatpush1.msra.mxu0 %v630
        %662 = vmatprep.subr.mxu0 0.0
        %663 = vmatpush1.msra.mxu0 %v631
        %664 = vmatprep.subr.mxu0 0.0
        %665 = vmatpush1.msra.mxu0 0.0
        %666 = vmatprep.subr.mxu0 0.0
        %667 = vmatpush1.msra.mxu0 0.0
        %668 = vmatprep.subr.mxu0 0.0
        %669 = vmatpush1.msra.mxu0 0.0
        %670 = vmatprep.subr.mxu0 0.0
        %671 = vmatpush1.msra.mxu0 0.0
        %672 = vmatprep.subr.mxu0 0.0
        %673 = vmatpush1.msra.mxu0 0.0
        %674 = vmatprep.subr.mxu0 0.0
        %675 = vmatpush1.msra.mxu0 0.0
        %676 = vmatprep.subr.mxu0 0.0
        %677 = vmatpush1.msra.mxu0 0.0
        %678 = vmatprep.subr.mxu0 0.0
        %679 = vmatpush1.msra.mxu0 0.0
        %680 = vmatprep.subr.mxu0 0.0
        %681 = vmatpush1.msra.mxu0 0.0
        %682 = vmatprep.subr.mxu0 0.0
        %683 = vmatpush1.msra.mxu0 0.0
        %684 = vmatprep.subr.mxu0 0.0
        %685 = vmatpush1.msra.mxu0 0.0
        %686 = vmatprep.subr.mxu0 0.0
        %687 = vmatpush1.msra.mxu0 0.0
        %688 = vmatprep.subr.mxu0 0.0
        %689 = vmatpush1.msra.mxu0 0.0
        %690 = vmatprep.subr.mxu0 0.0
        %691 = vmatpush1.msra.mxu0 0.0
        %692 = vmatprep.subr.mxu0 0.0
        %693 = vmatpush1.msra.mxu0 0.0
        %694 = vmatprep.subr.mxu0 0.0
        %695 = vmatpush1.msra.mxu0 0.0
        %696 = vmatprep.mubr.f32.mxu0 0.0
        %697 = vmatmul.mubr.f32.gmra.mrb[0].mxu0 %v613
        %v698 = vpop.f32.mrb[0].mxu0
        %v699 = vadd.f32 0.0, %v698
        %v700 = vpop.f32.mrb[0].mxu0
        %701 = vmatprep.mubr.f32.mxu0 0.0
        %702 = vmatmul.mubr.f32.gmra.mrb[0].mxu0 %v614
        %v703 = vpop.f32.mrb[0].mxu0
        %v704 = vadd.f32 0.0, %v703
        %v705 = vpop.f32.mrb[0].mxu0
        %706 = vmatprep.mubr.f32.mxu0 0.0
        %707 = vmatmul.mubr.f32.gmra.mrb[0].mxu0 %v615
        %v708 = vpop.f32.mrb[0].mxu0
        %v709 = vpop.f32.mrb[0].mxu0
        %710 = vdwg.mxu0
        %v711 = vadd.f32 %v699, 0.0
        %v712 = vadd.f32 %v704, 0.0
        %s713 = scalar_lea.vmem [#allocation5], 128
        %v714 = vld [vmem:[%s713] sm:$0xff]
        %v715 = vld [vmem:[%s713 + $0x8] sm:$0xff]
        %v716 = vld [vmem:[%s713 + $0x10] sm:$0xff]
        %v717 = vld [vmem:[%s713 + $0x18] sm:$0xff]
        %v718 = vld [vmem:[%s713 + $0x20] sm:$0xff]
        %v719 = vld [vmem:[%s713 + $0x28] sm:$0xff]
        %v720 = vld [vmem:[%s713 + $0x30] sm:$0xff]
        %v721 = vld [vmem:[%s713 + $0x38] sm:$0xff]
        %v722 = vld [vmem:[%s713 + $0x40] sm:$0xff]
        %v723 = vld [vmem:[%s713 + $0x48] sm:$0xff]
        %v724 = vld [vmem:[%s713 + $0x50] sm:$0xff]
        %v725 = vld [vmem:[%s713 + $0x58] sm:$0xff]
        %v726 = vld [vmem:[%s713 + $0x60] sm:$0xff]
        %v727 = vld [vmem:[%s713 + $0x68] sm:$0xff]
        %v728 = vld [vmem:[%s713 + $0x70] sm:$0xff]
        %v729 = vld [vmem:[%s713 + $0x78] sm:$0xff]
        %730 = vmatprep.subr.mxu0 0.0
        %731 = vmatpush1.msra.mxu0 %v714
        %732 = vmatprep.subr.mxu0 0.0
        %733 = vmatpush1.msra.mxu0 %v715
        %734 = vmatprep.subr.mxu0 0.0
        %735 = vmatpush1.msra.mxu0 %v716
        %736 = vmatprep.subr.mxu0 0.0
        %737 = vmatpush1.msra.mxu0 %v717
        %738 = vmatprep.subr.mxu0 0.0
        %739 = vmatpush1.msra.mxu0 %v718
        %740 = vmatprep.subr.mxu0 0.0
        %741 = vmatpush1.msra.mxu0 %v719
        %742 = vmatprep.subr.mxu0 0.0
        %743 = vmatpush1.msra.mxu0 %v720
        %744 = vmatprep.subr.mxu0 0.0
        %745 = vmatpush1.msra.mxu0 %v721
        %746 = vmatprep.subr.mxu0 0.0
        %747 = vmatpush1.msra.mxu0 %v722
        %748 = vmatprep.subr.mxu0 0.0
        %749 = vmatpush1.msra.mxu0 %v723
        %750 = vmatprep.subr.mxu0 0.0
        %751 = vmatpush1.msra.mxu0 %v724
        %752 = vmatprep.subr.mxu0 0.0
        %753 = vmatpush1.msra.mxu0 %v725
        %754 = vmatprep.subr.mxu0 0.0
        %755 = vmatpush1.msra.mxu0 %v726
        %756 = vmatprep.subr.mxu0 0.0
        %757 = vmatpush1.msra.mxu0 %v727
        %758 = vmatprep.subr.mxu0 0.0
        %759 = vmatpush1.msra.mxu0 %v728
        %760 = vmatprep.subr.mxu0 0.0
        %761 = vmatpush1.msra.mxu0 %v729
        %762 = vmatprep.subr.mxu0 0.0
        %763 = vmatpush1.msra.mxu0 0.0
        %764 = vmatprep.subr.mxu0 0.0
        %765 = vmatpush1.msra.mxu0 0.0
        %766 = vmatprep.subr.mxu0 0.0
        %767 = vmatpush1.msra.mxu0 0.0
        %768 = vmatprep.subr.mxu0 0.0
        %769 = vmatpush1.msra.mxu0 0.0
        %770 = vmatprep.subr.mxu0 0.0
        %771 = vmatpush1.msra.mxu0 0.0
        %772 = vmatprep.subr.mxu0 0.0
        %773 = vmatpush1.msra.mxu0 0.0
        %774 = vmatprep.subr.mxu0 0.0
        %775 = vmatpush1.msra.mxu0 0.0
        %776 = vmatprep.subr.mxu0 0.0
        %777 = vmatpush1.msra.mxu0 0.0
        %778 = vmatprep.subr.mxu0 0.0
        %779 = vmatpush1.msra.mxu0 0.0
        %780 = vmatprep.subr.mxu0 0.0
        %781 = vmatpush1.msra.mxu0 0.0
        %782 = vmatprep.subr.mxu0 0.0
        %783 = vmatpush1.msra.mxu0 0.0
        %784 = vmatprep.subr.mxu0 0.0
        %785 = vmatpush1.msra.mxu0 0.0
        %786 = vmatprep.subr.mxu0 0.0
        %787 = vmatpush1.msra.mxu0 0.0
        %788 = vmatprep.subr.mxu0 0.0
        %789 = vmatpush1.msra.mxu0 0.0
        %790 = vmatprep.subr.mxu0 0.0
        %791 = vmatpush1.msra.mxu0 0.0
        %792 = vmatprep.subr.mxu0 0.0
        %793 = vmatpush1.msra.mxu0 0.0
        %794 = vmatprep.mubr.f32.mxu0 0.0
        %795 = vmatmul.mubr.f32.gmra.mrb[0].mxu0 %v613
        %v796 = vpop.f32.mrb[0].mxu0
        %v797 = vadd.f32 0.0, %v796
        %v798 = vpop.f32.mrb[0].mxu0
        %799 = vmatprep.mubr.f32.mxu0 0.0
        %800 = vmatmul.mubr.f32.gmra.mrb[0].mxu0 %v614
        %v801 = vpop.f32.mrb[0].mxu0
        %v802 = vadd.f32 0.0, %v801
        %v803 = vpop.f32.mrb[0].mxu0
        %804 = vmatprep.mubr.f32.mxu0 0.0
        %805 = vmatmul.mubr.f32.gmra.mrb[0].mxu0 %v615
        %v806 = vpop.f32.mrb[0].mxu0
        %v807 = vadd.f32 0.0, %v806
        %v808 = vpop.f32.mrb[0].mxu0
        %809 = vdwg.mxu0
        %vm813 = vcmask 1046528
        %v814 = vrot.slane %v797, 1
        %v815 = vrot.slane %v802, 1
        %v816 = vsel %vm813, %v814, %v815
        %v817 = vrot.slane %v807, 1
        %v818 = vsel %vm813, %v815, %v817
        %v821 = vadd.f32 %v711, %v816
        %v822 = vadd.f32 %v712, %v818
        %s823 = scalar_lea.vmem [#allocation5], 256
        %v824 = vld [vmem:[%s823] sm:$0xff]
        %v825 = vld [vmem:[%s823 + $0x8] sm:$0xff]
        %v826 = vld [vmem:[%s823 + $0x10] sm:$0xff]
        %v827 = vld [vmem:[%s823 + $0x18] sm:$0xff]
        %v828 = vld [vmem:[%s823 + $0x20] sm:$0xff]
        %v829 = vld [vmem:[%s823 + $0x28] sm:$0xff]
        %v830 = vld [vmem:[%s823 + $0x30] sm:$0xff]
        %v831 = vld [vmem:[%s823 + $0x38] sm:$0xff]
        %v832 = vld [vmem:[%s823 + $0x40] sm:$0xff]
        %v833 = vld [vmem:[%s823 + $0x48] sm:$0xff]
        %v834 = vld [vmem:[%s823 + $0x50] sm:$0xff]
        %v835 = vld [vmem:[%s823 + $0x58] sm:$0xff]
        %v836 = vld [vmem:[%s823 + $0x60] sm:$0xff]
        %v837 = vld [vmem:[%s823 + $0x68] sm:$0xff]
        %v838 = vld [vmem:[%s823 + $0x70] sm:$0xff]
        %v839 = vld [vmem:[%s823 + $0x78] sm:$0xff]
        %840 = vmatprep.subr.mxu0 0.0
        %841 = vmatpush1.msra.mxu0 %v824
        %842 = vmatprep.subr.mxu0 0.0
        %843 = vmatpush1.msra.mxu0 %v825
        %844 = vmatprep.subr.mxu0 0.0
        %845 = vmatpush1.msra.mxu0 %v826
        %846 = vmatprep.subr.mxu0 0.0
        %847 = vmatpush1.msra.mxu0 %v827
        %848 = vmatprep.subr.mxu0 0.0
        %849 = vmatpush1.msra.mxu0 %v828
        %850 = vmatprep.subr.mxu0 0.0
        %851 = vmatpush1.msra.mxu0 %v829
        %852 = vmatprep.subr.mxu0 0.0
        %853 = vmatpush1.msra.mxu0 %v830
        %854 = vmatprep.subr.mxu0 0.0
        %855 = vmatpush1.msra.mxu0 %v831
        %856 = vmatprep.subr.mxu0 0.0
        %857 = vmatpush1.msra.mxu0 %v832
        %858 = vmatprep.subr.mxu0 0.0
        %859 = vmatpush1.msra.mxu0 %v833
        %860 = vmatprep.subr.mxu0 0.0
        %861 = vmatpush1.msra.mxu0 %v834
        %862 = vmatprep.subr.mxu0 0.0
        %863 = vmatpush1.msra.mxu0 %v835
        %864 = vmatprep.subr.mxu0 0.0
        %865 = vmatpush1.msra.mxu0 %v836
        %866 = vmatprep.subr.mxu0 0.0
        %867 = vmatpush1.msra.mxu0 %v837
        %868 = vmatprep.subr.mxu0 0.0
        %869 = vmatpush1.msra.mxu0 %v838
        %870 = vmatprep.subr.mxu0 0.0
        %871 = vmatpush1.msra.mxu0 %v839
        %872 = vmatprep.subr.mxu0 0.0
        %873 = vmatpush1.msra.mxu0 0.0
        %874 = vmatprep.subr.mxu0 0.0
        %875 = vmatpush1.msra.mxu0 0.0
        %876 = vmatprep.subr.mxu0 0.0
        %877 = vmatpush1.msra.mxu0 0.0
        %878 = vmatprep.subr.mxu0 0.0
        %879 = vmatpush1.msra.mxu0 0.0
        %880 = vmatprep.subr.mxu0 0.0
        %881 = vmatpush1.msra.mxu0 0.0
        %882 = vmatprep.subr.mxu0 0.0
        %883 = vmatpush1.msra.mxu0 0.0
        %884 = vmatprep.subr.mxu0 0.0
        %885 = vmatpush1.msra.mxu0 0.0
        %886 = vmatprep.subr.mxu0 0.0
        %887 = vmatpush1.msra.mxu0 0.0
        %888 = vmatprep.subr.mxu0 0.0
        %889 = vmatpush1.msra.mxu0 0.0
        %890 = vmatprep.subr.mxu0 0.0
        %891 = vmatpush1.msra.mxu0 0.0
        %892 = vmatprep.subr.mxu0 0.0
        %893 = vmatpush1.msra.mxu0 0.0
        %894 = vmatprep.subr.mxu0 0.0
        %895 = vmatpush1.msra.mxu0 0.0
        %896 = vmatprep.subr.mxu0 0.0
        %897 = vmatpush1.msra.mxu0 0.0
        %898 = vmatprep.subr.mxu0 0.0
        %899 = vmatpush1.msra.mxu0 0.0
        %900 = vmatprep.subr.mxu0 0.0
        %901 = vmatpush1.msra.mxu0 0.0
        %902 = vmatprep.subr.mxu0 0.0
        %903 = vmatpush1.msra.mxu0 0.0
        %904 = vmatprep.mubr.f32.mxu0 0.0
        %905 = vmatmul.mubr.f32.gmra.mrb[0].mxu0 %v613
        %v906 = vpop.f32.mrb[0].mxu0
        %v907 = vadd.f32 0.0, %v906
        %v908 = vpop.f32.mrb[0].mxu0
        %909 = vmatprep.mubr.f32.mxu0 0.0
        %910 = vmatmul.mubr.f32.gmra.mrb[0].mxu0 %v614
        %v911 = vpop.f32.mrb[0].mxu0
        %v912 = vadd.f32 0.0, %v911
        %v913 = vpop.f32.mrb[0].mxu0
        %914 = vmatprep.mubr.f32.mxu0 0.0
        %915 = vmatmul.mubr.f32.gmra.mrb[0].mxu0 %v615
        %v916 = vpop.f32.mrb[0].mxu0
        %v917 = vadd.f32 0.0, %v916
        %v918 = vpop.f32.mrb[0].mxu0
        %919 = vdwg.mxu0
        %vm923 = vcmask 1045504
        %v924 = vrot.slane %v907, 2
        %v925 = vrot.slane %v912, 2
        %v926 = vsel %vm923, %v924, %v925
        %v927 = vrot.slane %v917, 2
        %v928 = vsel %vm923, %v925, %v927
        %v931 = vadd.f32 %v821, %v926
        %v932 = vadd.f32 %v822, %v928
        %v933 = vld [vmem:[%s4] sm:$0x1]
        %v935 = vlaneseq
        %v936 = vshrl.u32 %v935, 7
        %v937 = vsub.s32 0, %v936
        %v938 = vrot.slane %v933, %v937
        %v940 = vadd.f32 %v931, %v938
        %v941 = vadd.f32 %v932, %v938
        %942 = vst [vmem:[%s261] sm:$0xff] %v940
        %943 = vst [vmem:[%s261 + $0x8] sm:$0xff] %v941
        %s944 = sand.u32 %s153, 1
        %s945 = scalar_lea.sflag [#allocation4], %s944
        %s946 = sand.u32 %s153, 1
        %s947 = smul.addr %s946, 16
        %s948 = scalar_lea.vmem [#allocation7], %s947
        // Predicated region
        $region49: #{tpu_custom_call.1} parent=39 // pred_check
          %p949 = pneg %p163
        $region50: #{tpu_custom_call.1} parent=39 // pred_check_branch
          %951 = sbr.rel (%p949) target = $region52
        $region51: #{tpu_custom_call.1} parent=39 // pred_region
          %s952 = smul.u32 2, %s26
          %s954 = ssub.s32 256, 256
          %955 = vsyncadd %s945, %s954
          %s956 = smul.addr %s25, 2
          %s957 = sadd.s32 %s952, %s956
          %s958 = smul.addr %s957, 128
          %s959 = scalar_lea.hbm %s5, %s958
          %s960 = sshll.u32 %s948, 4
          %s961 = int_to_ptr.vmem [resolvable:$true] %s960
          %966 = dma.vmem_to_hbm [thread:$0]  %s961, 256, %s959, %s945, 128, 128, 8
        $region52: #{tpu_custom_call.1} parent=39 // pred_fallthru
          _
      $region40: #{tpu_custom_call.1} parent=5 // pred_fallthru
        _
      %p967 = scmp.le.s32.totalorder 2, %s16
      // Predicated region
      $region53: #{tpu_custom_call.1} parent=5 // pred_check
        %p968 = pneg %p967
      $region54: #{tpu_custom_call.1} parent=5 // pred_check_branch
        %970 = sbr.rel (%p968) target = $region56
      $region55: #{tpu_custom_call.1} parent=5 // pred_region
        %s971 = ssub.s32 %s16, 2
        // Predicated region
        $region57: #{tpu_custom_call.1} parent=55 // pred_check
          %p972 = pneg %p169
        $region58: #{tpu_custom_call.1} parent=55 // pred_check_branch
          %974 = sbr.rel (%p972) target = $region60
        $region59: #{tpu_custom_call.1} parent=55 // pred_region
          %s975 = sand.u32 %s154, 1
          %s976 = scalar_lea.sflag [#allocation4], %s975
          %s977 = sand.u32 %s154, 1
          %s978 = smul.addr %s977, 16
          %s979 = scalar_lea.vmem [#allocation7], %s978
          %980 = dma.done %s976, 256
        $region60: #{tpu_custom_call.1} parent=55 // pred_fallthru
          _
      $region56: #{tpu_custom_call.1} parent=5 // pred_fallthru
        _
    $region6: #{tpu_custom_call.1} parent=1 // loop_footer
      %s20 = sadd.s32 1, %s16
    $region7: #{tpu_custom_call.1} parent=1 // loop_footer_branch
      %15 = sbr.rel target = $region3
    $region8: #{tpu_custom_call.1} parent=1 // loop_exit
      _
    %981 = vsyncpa [#allocation3], 1
    %s982 = scalar_lea.sflag [#allocation3], 1
    %983 = vsyncpa %s982, 1
    %984 = vsyncpa [#allocation6], 1
    %985 = vsyncpa [#allocation4], 1
    %s986 = scalar_lea.sflag [#allocation4], 1
    %987 = vsyncpa %s986, 1

</llo_original>
